<compile_context>
chip_gen: v7x
topology: tpu7x:2x2x1
jax: 0.10.0
libtpu: 0.0.40
codegen_flags: <defaults>
</compile_context>

<pallas_src>
import functools

import jax
import jax.numpy as jnp
from jax.experimental import pallas as pl
from jax.experimental.pallas import tpu as pltpu

D_MODEL = 768   # Longformer hidden size
LANES = 128     # TPU lane width
MAX_TB = 512    # batch-tile cap (sweep point from review)


def _round_up(x, m):
    return -(-x // m) * m


def _batch_tiling(batch):
    """Pick (tile_rows, padded_batch).

    * tile rows are a sublane multiple (8), capped at MAX_TB,
    * batches that fit in one <=512-row tile get a single grid step
      (per-step overhead dominates this tiny head),
    * larger batches get >= 2 roughly equal tiles so v7x's second
      TensorCore has work under dimension_semantics=("parallel",).
    """
    b8 = _round_up(batch, 8)
    n_tiles = _round_up(b8, MAX_TB) // MAX_TB
    if b8 >= MAX_TB:
        n_tiles = max(n_tiles, 2)
    tb = _round_up(-(-b8 // n_tiles), 8)
    return tb, n_tiles * tb


def _bf16_tanh_ok():
    """bf16 EUP path exists on v6e/v7x; keep f32 elementwise math on v5e."""
    try:
        kind = jax.devices()[0].device_kind.lower()
    except Exception:  # pragma: no cover - defensive default
        return False
    return ("v6" in kind) or ("v7" in kind)


def siamese_head_kernel(cls_ref, wp_ref, bp_ref, w1_ref, b1_ref, w2_ref, b2_ref,
                        out_ref, *, tanh_dtype):
    """Fused head: pooler(tanh) -> FC1 -> ReLU -> FC2(lane reduce) -> sigmoid.

    cls_ref: (TB, 768)    bf16  CLS-position hidden state tile
    wp_ref:  (768, 768)   bf16  pooler weight (resident)
    bp_ref:  (1, 768)     f32   pooler bias
    w1_ref:  (768, Hp)    bf16  FC1 weight (Hp = hidden padded to 128)
    b1_ref:  (1, Hp)      f32   FC1 bias (zero in padded columns)
    w2_ref:  (1, Hp)      f32   FC2 weight as a row (zero in padded columns)
    b2_ref:  (1, 1)       f32   FC2 bias (SMEM scalar)
    out_ref: (TB, 128)    f32   sigmoid output lane-broadcast (lane-dense store)
    """
    cls = cls_ref[...]                                           # bf16

    # Longformer pooler: tanh(Linear(h_CLS)) — MXU bf16, f32 accumulate;
    # tanh in bf16 on v6e/v7x (result feeds the bf16 FC1 MXU anyway).
    acc = (jnp.dot(cls, wp_ref[...], preferred_element_type=jnp.float32)
           + bp_ref[...])
    pooled = jnp.tanh(acc.astype(tanh_dtype))

    # FC1 + ReLU (feed bf16 to MXU, accumulate / bias / relu in f32).
    h = jnp.maximum(
        jnp.dot(pooled.astype(jnp.bfloat16), w1_ref[...],
                preferred_element_type=jnp.float32)
        + b1_ref[...], 0.0)

    # FC2 as VPU multiply + cross-lane reduction (avoids a degenerate N=1 matmul).
    logit = jnp.sum(h * w2_ref[...], axis=-1, keepdims=True) + b2_ref[0, 0]

    # Lane-dense store: broadcast the (TB,1) column across 128 lanes.
    out_ref[...] = jnp.broadcast_to(jax.nn.sigmoid(logit), out_ref.shape)


def siamese_margin_forward(input_ids, attention_mask, params):
    """Forward pass matching Siamese_margin.forward semantics.

    input_ids:      (B, S) int32
    attention_mask: (B, S) int32/float (consumed only by the omitted encoder)
    returns:        (B,)   float32 in (0, 1)
    """
    # TODO(synk): the pretrained 12-layer Longformer encoder (sliding-window /
    # global attention) has no clean self-contained Pallas equivalent without
    # checkpoint weights; the pooler consumes the CLS-position embedding.
    del attention_mask                              # used only by omitted encoder

    B = input_ids.shape[0]
    Hp = params["w1"].shape[1]
    TB, B_pad = _batch_tiling(B)

    # Fold batch padding into the gather: one gather producing (B_pad, 768)
    # directly (no (B,768) pad copy of the activation in HBM).
    cls_ids = input_ids[:, 0]
    if B_pad != B:
        cls_ids = jnp.pad(cls_ids, (0, B_pad - B))  # padded rows sliced off below
    cls = jnp.take(params["word_emb"], cls_ids, axis=0)          # (B_pad, 768) bf16

    tanh_dtype = jnp.bfloat16 if _bf16_tanh_ok() else jnp.float32
    kernel = functools.partial(siamese_head_kernel, tanh_dtype=tanh_dtype)

    out = pl.pallas_call(
        kernel,
        out_shape=jax.ShapeDtypeStruct((B_pad, LANES), jnp.float32),
        grid=(B_pad // TB,),
        in_specs=[
            pl.BlockSpec((TB, D_MODEL), lambda i: (i, 0)),          # cls tile
            pl.BlockSpec((D_MODEL, D_MODEL), lambda i: (0, 0)),     # pooler W (resident)
            pl.BlockSpec((1, D_MODEL), lambda i: (0, 0)),           # pooler b
            pl.BlockSpec((D_MODEL, Hp), lambda i: (0, 0)),          # FC1 W (resident)
            pl.BlockSpec((1, Hp), lambda i: (0, 0)),                # FC1 b
            pl.BlockSpec((1, Hp), lambda i: (0, 0)),                # FC2 W row
            pl.BlockSpec(memory_space=pltpu.MemorySpace.SMEM),      # FC2 b scalar
        ],
        out_specs=pl.BlockSpec((TB, LANES), lambda i: (i, 0)),      # lane-dense out
        compiler_params=pltpu.CompilerParams(
            dimension_semantics=("parallel",)),
    )(cls, params["wp"], params["bp"], params["w1"], params["b1"],
      params["w2_row"], params["b2"])

    return out[:B, 0]                               # torch .squeeze(1) -> (B,)


def init_params(key, hidden_size=32, vocab_size=1000):
    """Deterministic synthetic parameters in torch-like (in, out) layout."""
    ks = jax.random.split(key, 7)
    s = 0.02
    return {
        "word_emb": s * jax.random.normal(ks[0], (vocab_size, D_MODEL), jnp.float32),
        "wp": s * jax.random.normal(ks[1], (D_MODEL, D_MODEL), jnp.float32),
        "bp": s * jax.random.normal(ks[2], (D_MODEL,), jnp.float32),
        "w1": s * jax.random.normal(ks[3], (D_MODEL, hidden_size), jnp.float32),
        "b1": s * jax.random.normal(ks[4], (hidden_size,), jnp.float32),
        "w2": s * jax.random.normal(ks[5], (hidden_size, 1), jnp.float32),
        "b2": s * jax.random.normal(ks[6], (1,), jnp.float32),
    }


def prepare_params(raw, hidden_size):
    """Cast to kernel dtypes and zero-pad hidden dim to a lane multiple."""
    Hp = max(LANES, _round_up(hidden_size, LANES))
    w1 = jnp.zeros((D_MODEL, Hp), jnp.bfloat16).at[:, :hidden_size].set(
        raw["w1"].astype(jnp.bfloat16))
    b1 = jnp.zeros((1, Hp), jnp.float32).at[:, :hidden_size].set(
        raw["b1"].reshape(1, -1))
    w2_row = jnp.zeros((1, Hp), jnp.float32).at[:, :hidden_size].set(
        raw["w2"].reshape(1, -1))
    return {
        "word_emb": raw["word_emb"].astype(jnp.bfloat16),
        "wp": raw["wp"].astype(jnp.bfloat16),
        "bp": raw["bp"].reshape(1, -1).astype(jnp.float32),
        "w1": w1,
        "b1": b1,
        "w2_row": w2_row,
        "b2": raw["b2"].reshape(1, 1).astype(jnp.float32),
    }


def reference_forward(input_ids, params):
    """Pure-JAX reference using the same (bf16) parameters."""
    cls = params["word_emb"][input_ids[:, 0]].astype(jnp.float32)
    pooled = jnp.tanh(cls @ params["wp"].astype(jnp.float32) + params["bp"])
    h = jnp.maximum(pooled @ params["w1"].astype(jnp.float32) + params["b1"], 0.0)
    logit = jnp.sum(h * params["w2_row"], axis=-1) + params["b2"][0, 0]
    return jax.nn.sigmoid(logit)


if __name__ == "__main__":
    key = jax.random.PRNGKey(0)
    k_par, k_ids = jax.random.split(key)

    B, S, HIDDEN, VOCAB = 2, 8, 32, 1000
    raw = init_params(k_par, hidden_size=HIDDEN, vocab_size=VOCAB)
    params = prepare_params(raw, HIDDEN)

    input_ids = jax.random.randint(k_ids, (B, S), 0, VOCAB, dtype=jnp.int32)
    attention_mask = jnp.ones((B, S), dtype=jnp.int32)

    out = jax.jit(siamese_margin_forward)(input_ids, attention_mask, params)
    out = jax.block_until_ready(out)

    assert out.shape == (B,)
    assert bool(jnp.all((out > 0.0) & (out < 1.0)))

    ref = reference_forward(input_ids, params)
    assert bool(jnp.allclose(out, ref, atol=1e-2, rtol=1e-2))

    print("KERNEL_OK")
</pallas_src>

<mosaic_0001>
module attributes {stable_mosaic.version = 11 : i64} {
  func.func @siamese_head_kernel(%arg0: i32, %arg1: memref<8x768xbf16, #tpu.memory_space<vmem>>, %arg2: memref<768x768xbf16, #tpu.memory_space<vmem>>, %arg3: memref<1x768xf32, #tpu.memory_space<vmem>>, %arg4: memref<768x128xbf16, #tpu.memory_space<vmem>>, %arg5: memref<1x128xf32, #tpu.memory_space<vmem>>, %arg6: memref<1x128xf32, #tpu.memory_space<vmem>>, %arg7: memref<1x1xf32, #tpu.memory_space<smem>>, %arg8: memref<8x128xf32, #tpu.memory_space<vmem>>) attributes {dimension_semantics = [#tpu.dimension_semantics<parallel>], iteration_bounds = array<i64: 1>, scalar_prefetch = 0 : i64, scratch_operands = 0 : i64, tpu.core_type = #tpu.core_type<tc>, window_params = [{transform_indices = @transform_0, window_bounds = array<i64: 8, 768>}, {pipeline_mode = #tpu.pipeline_mode<synchronous>, transform_indices = @transform_1, window_bounds = array<i64: 768, 768>}, {pipeline_mode = #tpu.pipeline_mode<synchronous>, transform_indices = @transform_2, window_bounds = array<i64: 1, 768>}, {pipeline_mode = #tpu.pipeline_mode<synchronous>, transform_indices = @transform_3, window_bounds = array<i64: 768, 128>}, {pipeline_mode = #tpu.pipeline_mode<synchronous>, transform_indices = @transform_4, window_bounds = array<i64: 1, 128>}, {pipeline_mode = #tpu.pipeline_mode<synchronous>, transform_indices = @transform_5, window_bounds = array<i64: 1, 128>}, {transform_indices = @transform_6, window_bounds = array<i64: 1, 1>}, {transform_indices = @transform_7, window_bounds = array<i64: 8, 128>}]} {
    %c0 = arith.constant 0 : index
    %c0_0 = arith.constant 0 : index
    %0 = vector.load %arg1[%c0, %c0_0] : memref<8x768xbf16, #tpu.memory_space<vmem>>, vector<8x768xbf16>
    %c0_1 = arith.constant 0 : index
    %c0_2 = arith.constant 0 : index
    %1 = vector.load %arg2[%c0_1, %c0_2] : memref<768x768xbf16, #tpu.memory_space<vmem>>, vector<768x768xbf16>
    %cst = arith.constant dense<0.000000e+00> : vector<8x768xf32>
    %2 = tpu.matmul %0, %1, %cst {dimension_numbers = #tpu.dot_dimension_numbers<[1], [0], [0], [1], [0, 0, 1, 1], [], []>} : vector<8x768xbf16>, vector<768x768xbf16>, vector<8x768xf32> -> vector<8x768xf32>
    %c0_3 = arith.constant 0 : index
    %c0_4 = arith.constant 0 : index
    %3 = vector.load %arg3[%c0_3, %c0_4] : memref<1x768xf32, #tpu.memory_space<vmem>>, vector<1x768xf32>
    %4 = vector.broadcast %3 : vector<1x768xf32> to vector<8x768xf32>
    %5 = arith.addf %2, %4 : vector<8x768xf32>
    %6 = math.tanh %5 : vector<8x768xf32>
    %7 = arith.truncf %6 : vector<8x768xf32> to vector<8x768xbf16>
    %c0_5 = arith.constant 0 : index
    %c0_6 = arith.constant 0 : index
    %8 = vector.load %arg4[%c0_5, %c0_6] : memref<768x128xbf16, #tpu.memory_space<vmem>>, vector<768x128xbf16>
    %cst_7 = arith.constant dense<0.000000e+00> : vector<8x128xf32>
    %9 = tpu.matmul %7, %8, %cst_7 {dimension_numbers = #tpu.dot_dimension_numbers<[1], [0], [0], [1], [0, 0, 1, 1], [], []>} : vector<8x768xbf16>, vector<768x128xbf16>, vector<8x128xf32> -> vector<8x128xf32>
    %c0_8 = arith.constant 0 : index
    %c0_9 = arith.constant 0 : index
    %10 = vector.load %arg5[%c0_8, %c0_9] : memref<1x128xf32, #tpu.memory_space<vmem>>, vector<1x128xf32>
    %11 = vector.broadcast %10 : vector<1x128xf32> to vector<8x128xf32>
    %12 = arith.addf %9, %11 : vector<8x128xf32>
    %cst_10 = arith.constant 0.000000e+00 : f32
    %13 = vector.broadcast %cst_10 : f32 to vector<8x128xf32>
    %14 = arith.maximumf %12, %13 : vector<8x128xf32>
    %c0_11 = arith.constant 0 : index
    %c0_12 = arith.constant 0 : index
    %15 = vector.load %arg6[%c0_11, %c0_12] : memref<1x128xf32, #tpu.memory_space<vmem>>, vector<1x128xf32>
    %16 = vector.broadcast %15 : vector<1x128xf32> to vector<8x128xf32>
    %17 = arith.mulf %14, %16 : vector<8x128xf32>
    %cst_13 = arith.constant dense<0.000000e+00> : vector<8xf32>
    %18 = vector.multi_reduction <add>, %17, %cst_13 [1] : vector<8x128xf32> to vector<8xf32>
    %19 = vector.shape_cast %18 : vector<8xf32> to vector<8x1xf32>
    %c0_14 = arith.constant 0 : index
    %c0_15 = arith.constant 0 : index
    %20 = memref.load %arg7[%c0_14, %c0_15] : memref<1x1xf32, #tpu.memory_space<smem>>
    %21 = vector.broadcast %20 : f32 to vector<8x1xf32>
    %22 = arith.addf %19, %21 : vector<8x1xf32>
    %23 = arith.negf %22 : vector<8x1xf32>
    %24 = math.exp %23 : vector<8x1xf32>
    %cst_16 = arith.constant 1.000000e+00 : f32
    %25 = vector.broadcast %cst_16 : f32 to vector<8x1xf32>
    %26 = arith.addf %25, %24 : vector<8x1xf32>
    %27 = arith.divf %25, %26 : vector<8x1xf32>
    %28 = vector.shape_cast %27 : vector<8x1xf32> to vector<8x1xf32>
    %29 = vector.broadcast %28 : vector<8x1xf32> to vector<8x128xf32>
    %c0_17 = arith.constant 0 : index
    %c0_18 = arith.constant 0 : index
    %30 = vector.load %arg8[%c0_17, %c0_18] : memref<8x128xf32, #tpu.memory_space<vmem>>, vector<8x128xf32>
    tpu.vector_store %arg8[%c0_17, %c0_18], %29 {strides = array<i32>} : memref<8x128xf32, #tpu.memory_space<vmem>>, vector<8x128xf32>,
    return
  }
  func.func @transform_0(%arg0: i32) -> (i32, i32) {
    %c0_i32 = arith.constant 0 : i32
    %c0_i32_0 = arith.constant 0 : i32
    return %arg0, %c0_i32 : i32, i32
  }
  func.func @transform_1(%arg0: i32) -> (i32, i32) {
    %c0_i32 = arith.constant 0 : i32
    %c0_i32_0 = arith.constant 0 : i32
    %c0_i32_1 = arith.constant 0 : i32
    return %c0_i32, %c0_i32_0 : i32, i32
  }
  func.func @transform_2(%arg0: i32) -> (i32, i32) {
    %c0_i32 = arith.constant 0 : i32
    %c0_i32_0 = arith.constant 0 : i32
    %c0_i32_1 = arith.constant 0 : i32
    return %c0_i32, %c0_i32_0 : i32, i32
  }
  func.func @transform_3(%arg0: i32) -> (i32, i32) {
    %c0_i32 = arith.constant 0 : i32
    %c0_i32_0 = arith.constant 0 : i32
    %c0_i32_1 = arith.constant 0 : i32
    return %c0_i32, %c0_i32_0 : i32, i32
  }
  func.func @transform_4(%arg0: i32) -> (i32, i32) {
    %c0_i32 = arith.constant 0 : i32
    %c0_i32_0 = arith.constant 0 : i32
    %c0_i32_1 = arith.constant 0 : i32
    return %c0_i32, %c0_i32_0 : i32, i32
  }
  func.func @transform_5(%arg0: i32) -> (i32, i32) {
    %c0_i32 = arith.constant 0 : i32
    %c0_i32_0 = arith.constant 0 : i32
    %c0_i32_1 = arith.constant 0 : i32
    return %c0_i32, %c0_i32_0 : i32, i32
  }
  func.func @transform_6(%arg0: i32) -> (i32, i32) {
    %c0_i32 = arith.constant 0 : i32
    %c0_i32_0 = arith.constant 0 : i32
    %c0_i32_1 = arith.constant 0 : i32
    return %c0_i32, %c0_i32_0 : i32, i32
  }
  func.func @transform_7(%arg0: i32) -> (i32, i32) {
    %c0_i32 = arith.constant 0 : i32
    %c0_i32_0 = arith.constant 0 : i32
    return %arg0, %c0_i32 : i32, i32
  }
}

</mosaic_0001>

<llo_original>
// kernel: siamese_margin_forward.1
$region0: #{siamese_margin_forward.1}
  #allocation0 [shape = 'u32[]', space=smem, size = 0x4, offset = 0x4, fixed_abs, tag = 'smem constant byte address 0x4 - core index']
  #allocation1 [shape = 'u32[144,128]{1,0:T(1,128)}', space=vmem, size = 0x12000, scoped, tag = 'internal scratch']
  #allocation2 [shape = 'f32[1,1]{1,0:T(1,128)S(6)}', space=smem, size = 0x200, scoped, tag = 'scoped memory for siamese_margin_forward.1']
  %s0 = inlined_call_operand.vmem [shape: bf16[8,768], index: 0, kind: input, shape index: {}]
  %s1 = inlined_call_operand.hbm [shape: bf16[768,768], index: 1, kind: input, shape index: {}]
  %s2 = inlined_call_operand.hbm [shape: f32[1,768], index: 2, kind: input, shape index: {}]
  %s3 = inlined_call_operand.hbm [shape: bf16[768,128], index: 3, kind: input, shape index: {}]
  %s4 = inlined_call_operand.hbm [shape: f32[1,128], index: 4, kind: input, shape index: {}]
  %s5 = inlined_call_operand.hbm [shape: f32[1,128], index: 5, kind: input, shape index: {}]
  %s6 = inlined_call_operand.<no memory space> [shape: f32[1,1], index: 6, kind: input, shape index: {}]
  %s7 = inlined_call_operand.vmem [shape: f32[8,128], index: 7, kind: output, shape index: {}]
  %s8 = sld [smem:[#allocation0]]
  $region58: #{siamese_margin_forward.1} parent=0
    _
  %s10 = ssub.s32 1, %s8
  %s11 = scalar_select 0, %s10, %s8
  %12 = sst [smem:[#allocation2]] %s6
  $region1: #{siamese_margin_forward.1} parent=0
    #allocation3 [shape = 'u8[1179648]{0}', space=vmem, size = 0x120000, scoped, tag = 'input window, operand 1, single buffered']
    #allocation4 [shape = 's32[1]{0}', space=sflag, size = 0x4, scoped, tag = 'scoped memory for siamese_margin_forward.1']
    #allocation5 [shape = 'u8[3072]{0}', space=vmem, size = 0xc00, scoped, tag = 'input window, operand 2, single buffered']
    #allocation6 [shape = 's32[1]{0}', space=sflag, size = 0x4, scoped, tag = 'scoped memory for siamese_margin_forward.1']
    #allocation7 [shape = 'u8[196608]{0}', space=vmem, size = 0x30000, scoped, tag = 'input window, operand 3, single buffered']
    #allocation8 [shape = 'u8[512]{0}', space=vmem, size = 0x400, scoped, tag = 'input window, operand 4, single buffered']
    #allocation9 [shape = 's32[1]{0}', space=sflag, size = 0x4, scoped, tag = 'scoped memory for siamese_margin_forward.1']
    #allocation10 [shape = 'u8[512]{0}', space=vmem, size = 0x400, scoped, tag = 'input window, operand 5, single buffered']
    %13 = vsyncpa [#allocation4], 0
    %14 = vsyncpa [#allocation6], 0
    %15 = vsyncpa [#allocation9], 0
    // Predicated region
    $region2: #{siamese_margin_forward.1} parent=1 // pred_check
      _
    $region3: #{siamese_margin_forward.1} parent=1 // pred_check_branch
      %17 = sbr.rel (0) target = $region5
    $region4: #{siamese_margin_forward.1} parent=1 // pred_region
      _
    $region5: #{siamese_margin_forward.1} parent=1 // pred_fallthru
      _
    // Predicated region
    $region6: #{siamese_margin_forward.1} parent=1 // pred_check
      _
    $region7: #{siamese_margin_forward.1} parent=1 // pred_check_branch
      %19 = sbr.rel (0) target = $region9
    $region8: #{siamese_margin_forward.1} parent=1 // pred_region
      %s21 = ssub.s32 36864, 36864
      %22 = vsyncadd [#allocation4], %s21
      %s23 = sshll.u32 [#allocation3], 4
      %s24 = int_to_ptr.vmem [resolvable:$true] %s23
      %29 = dma.hbm_to_vmem [thread:$0]  %s1, 36864, %s24, [#allocation4], 384, 384, 24
    $region9: #{siamese_margin_forward.1} parent=1 // pred_fallthru
      _
    // Predicated region
    $region10: #{siamese_margin_forward.1} parent=1 // pred_check
      _
    $region11: #{siamese_margin_forward.1} parent=1 // pred_check_branch
      %31 = sbr.rel (0) target = $region13
    $region12: #{siamese_margin_forward.1} parent=1 // pred_region
      %s33 = ssub.s32 96, 96
      %34 = vsyncadd [#allocation6], %s33
      %s36 = sshll.u32 [#allocation5], 4
      %s37 = int_to_ptr.vmem [resolvable:$true] %s36
      %39 = dma.hbm_to_vmem [thread:$0]  %s2, 96, %s37, [#allocation6]
    $region13: #{siamese_margin_forward.1} parent=1 // pred_fallthru
      _
    // Predicated region
    $region14: #{siamese_margin_forward.1} parent=1 // pred_check
      _
    $region15: #{siamese_margin_forward.1} parent=1 // pred_check_branch
      %41 = sbr.rel (0) target = $region17
    $region16: #{siamese_margin_forward.1} parent=1 // pred_region
      %s43 = ssub.s32 6144, 6144
      %44 = vsyncadd [#allocation6], %s43
      %s45 = sshll.u32 [#allocation7], 4
      %s46 = int_to_ptr.vmem [resolvable:$true] %s45
      %51 = dma.hbm_to_vmem [thread:$0]  %s3, 6144, %s46, [#allocation6], 64, 64, 4
    $region17: #{siamese_margin_forward.1} parent=1 // pred_fallthru
      _
    // Predicated region
    $region18: #{siamese_margin_forward.1} parent=1 // pred_check
      _
    $region19: #{siamese_margin_forward.1} parent=1 // pred_check_branch
      %53 = sbr.rel (0) target = $region21
    $region20: #{siamese_margin_forward.1} parent=1 // pred_region
      %s55 = ssub.s32 16, 16
      %56 = vsyncadd [#allocation9], %s55
      %s58 = sshll.u32 [#allocation8], 4
      %s59 = int_to_ptr.vmem [resolvable:$true] %s58
      %61 = dma.hbm_to_vmem [thread:$0]  %s4, 16, %s59, [#allocation9]
    $region21: #{siamese_margin_forward.1} parent=1 // pred_fallthru
      _
    // Predicated region
    $region22: #{siamese_margin_forward.1} parent=1 // pred_check
      _
    $region23: #{siamese_margin_forward.1} parent=1 // pred_check_branch
      %63 = sbr.rel (0) target = $region25
    $region24: #{siamese_margin_forward.1} parent=1 // pred_region
      %s65 = ssub.s32 16, 16
      %66 = vsyncadd [#allocation9], %s65
      %s68 = sshll.u32 [#allocation10], 4
      %s69 = int_to_ptr.vmem [resolvable:$true] %s68
      %71 = dma.hbm_to_vmem [thread:$0]  %s5, 16, %s69, [#allocation9]
    $region25: #{siamese_margin_forward.1} parent=1 // pred_fallthru
      _
    // Predicated region
    $region26: #{siamese_margin_forward.1} parent=1 // pred_check
      _
    $region27: #{siamese_margin_forward.1} parent=1 // pred_check_branch
      %73 = sbr.rel (0) target = $region29
    $region28: #{siamese_margin_forward.1} parent=1 // pred_region
      _
    $region29: #{siamese_margin_forward.1} parent=1 // pred_fallthru
      _
    // Predicated region
    $region30: #{siamese_margin_forward.1} parent=1 // pred_check
      _
    $region31: #{siamese_margin_forward.1} parent=1 // pred_check_branch
      %75 = sbr.rel (0) target = $region33
    $region32: #{siamese_margin_forward.1} parent=1 // pred_region
      %76 = dma.done [#allocation4], 36864
    $region33: #{siamese_margin_forward.1} parent=1 // pred_fallthru
      _
    // Predicated region
    $region34: #{siamese_margin_forward.1} parent=1 // pred_check
      _
    $region35: #{siamese_margin_forward.1} parent=1 // pred_check_branch
      %78 = sbr.rel (0) target = $region37
    $region36: #{siamese_margin_forward.1} parent=1 // pred_region
      %79 = dma.done [#allocation6], 96
    $region37: #{siamese_margin_forward.1} parent=1 // pred_fallthru
      _
    // Predicated region
    $region38: #{siamese_margin_forward.1} parent=1 // pred_check
      _
    $region39: #{siamese_margin_forward.1} parent=1 // pred_check_branch
      %81 = sbr.rel (0) target = $region41
    $region40: #{siamese_margin_forward.1} parent=1 // pred_region
      %82 = dma.done [#allocation6], 6144
    $region41: #{siamese_margin_forward.1} parent=1 // pred_fallthru
      _
    // Predicated region
    $region42: #{siamese_margin_forward.1} parent=1 // pred_check
      _
    $region43: #{siamese_margin_forward.1} parent=1 // pred_check_branch
      %84 = sbr.rel (0) target = $region45
    $region44: #{siamese_margin_forward.1} parent=1 // pred_region
      %85 = dma.done [#allocation9], 16
    $region45: #{siamese_margin_forward.1} parent=1 // pred_fallthru
      _
    // Predicated region
    $region46: #{siamese_margin_forward.1} parent=1 // pred_check
      _
    $region47: #{siamese_margin_forward.1} parent=1 // pred_check_branch
      %87 = sbr.rel (0) target = $region49
    $region48: #{siamese_margin_forward.1} parent=1 // pred_region
      %88 = dma.done [#allocation9], 16
    $region49: #{siamese_margin_forward.1} parent=1 // pred_fallthru
      _
    %v90 = vld [vmem:[%s0] sm:$0xff]
    %v91 = vld [vmem:[%s0 + $0x8] sm:$0xff]
    %v92 = vld [vmem:[%s0 + $0x10] sm:$0xff]
    %v93 = vld [vmem:[#allocation3] sm:$0xff]
    %v94 = vld [vmem:[#allocation3 + $0x8] sm:$0xff]
    %v95 = vld [vmem:[#allocation3 + $0x10] sm:$0xff]
    %v96 = vld [vmem:[#allocation3 + $0x18] sm:$0xff]
    %v97 = vld [vmem:[#allocation3 + $0x20] sm:$0xff]
    %v98 = vld [vmem:[#allocation3 + $0x28] sm:$0xff]
    %v99 = vld [vmem:[#allocation3 + $0x30] sm:$0xff]
    %v100 = vld [vmem:[#allocation3 + $0x38] sm:$0xff]
    %v101 = vld [vmem:[#allocation3 + $0x40] sm:$0xff]
    %v102 = vld [vmem:[#allocation3 + $0x48] sm:$0xff]
    %v103 = vld [vmem:[#allocation3 + $0x50] sm:$0xff]
    %v104 = vld [vmem:[#allocation3 + $0x58] sm:$0xff]
    %v105 = vld [vmem:[#allocation3 + $0x60] sm:$0xff]
    %v106 = vld [vmem:[#allocation3 + $0x68] sm:$0xff]
    %v107 = vld [vmem:[#allocation3 + $0x70] sm:$0xff]
    %v108 = vld [vmem:[#allocation3 + $0x78] sm:$0xff]
    %v109 = vld [vmem:[#allocation3 + $0x80] sm:$0xff]
    %v110 = vld [vmem:[#allocation3 + $0x88] sm:$0xff]
    %v111 = vld [vmem:[#allocation3 + $0x90] sm:$0xff]
    %v112 = vld [vmem:[#allocation3 + $0x98] sm:$0xff]
    %v113 = vld [vmem:[#allocation3 + $0xa0] sm:$0xff]
    %v114 = vld [vmem:[#allocation3 + $0xa8] sm:$0xff]
    %v115 = vld [vmem:[#allocation3 + $0xb0] sm:$0xff]
    %v116 = vld [vmem:[#allocation3 + $0xb8] sm:$0xff]
    %v117 = vld [vmem:[#allocation3 + $0xc0] sm:$0xff]
    %v118 = vld [vmem:[#allocation3 + $0xc8] sm:$0xff]
    %v119 = vld [vmem:[#allocation3 + $0xd0] sm:$0xff]
    %v120 = vld [vmem:[#allocation3 + $0xd8] sm:$0xff]
    %v121 = vld [vmem:[#allocation3 + $0xe0] sm:$0xff]
    %v122 = vld [vmem:[#allocation3 + $0xe8] sm:$0xff]
    %v123 = vld [vmem:[#allocation3 + $0xf0] sm:$0xff]
    %v124 = vld [vmem:[#allocation3 + $0xf8] sm:$0xff]
    %v125 = vld [vmem:[#allocation3 + $0x100] sm:$0xff]
    %v126 = vld [vmem:[#allocation3 + $0x108] sm:$0xff]
    %v127 = vld [vmem:[#allocation3 + $0x110] sm:$0xff]
    %v128 = vld [vmem:[#allocation3 + $0x118] sm:$0xff]
    %v129 = vld [vmem:[#allocation3 + $0x120] sm:$0xff]
    %v130 = vld [vmem:[#allocation3 + $0x128] sm:$0xff]
    %v131 = vld [vmem:[#allocation3 + $0x130] sm:$0xff]
    %v132 = vld [vmem:[#allocation3 + $0x138] sm:$0xff]
    %v133 = vld [vmem:[#allocation3 + $0x140] sm:$0xff]
    %v134 = vld [vmem:[#allocation3 + $0x148] sm:$0xff]
    %v135 = vld [vmem:[#allocation3 + $0x150] sm:$0xff]
    %v136 = vld [vmem:[#allocation3 + $0x158] sm:$0xff]
    %v137 = vld [vmem:[#allocation3 + $0x160] sm:$0xff]
    %v138 = vld [vmem:[#allocation3 + $0x168] sm:$0xff]
    %v139 = vld [vmem:[#allocation3 + $0x170] sm:$0xff]
    %v140 = vld [vmem:[#allocation3 + $0x178] sm:$0xff]
    %v141 = vld [vmem:[#allocation3 + $0x180] sm:$0xff]
    %v142 = vld [vmem:[#allocation3 + $0x188] sm:$0xff]
    %v143 = vld [vmem:[#allocation3 + $0x190] sm:$0xff]
    %v144 = vld [vmem:[#allocation3 + $0x198] sm:$0xff]
    %v145 = vld [vmem:[#allocation3 + $0x1a0] sm:$0xff]
    %v146 = vld [vmem:[#allocation3 + $0x1a8] sm:$0xff]
    %v147 = vld [vmem:[#allocation3 + $0x1b0] sm:$0xff]
    %v148 = vld [vmem:[#allocation3 + $0x1b8] sm:$0xff]
    %v149 = vld [vmem:[#allocation3 + $0x1c0] sm:$0xff]
    %v150 = vld [vmem:[#allocation3 + $0x1c8] sm:$0xff]
    %v151 = vld [vmem:[#allocation3 + $0x1d0] sm:$0xff]
    %v152 = vld [vmem:[#allocation3 + $0x1d8] sm:$0xff]
    %v153 = vld [vmem:[#allocation3 + $0x1e0] sm:$0xff]
    %v154 = vld [vmem:[#allocation3 + $0x1e8] sm:$0xff]
    %v155 = vld [vmem:[#allocation3 + $0x1f0] sm:$0xff]
    %v156 = vld [vmem:[#allocation3 + $0x1f8] sm:$0xff]
    %v157 = vld [vmem:[#allocation3 + $0x200] sm:$0xff]
    %v158 = vld [vmem:[#allocation3 + $0x208] sm:$0xff]
    %v159 = vld [vmem:[#allocation3 + $0x210] sm:$0xff]
    %v160 = vld [vmem:[#allocation3 + $0x218] sm:$0xff]
    %v161 = vld [vmem:[#allocation3 + $0x220] sm:$0xff]
    %v162 = vld [vmem:[#allocation3 + $0x228] sm:$0xff]
    %v163 = vld [vmem:[#allocation3 + $0x230] sm:$0xff]
    %v164 = vld [vmem:[#allocation3 + $0x238] sm:$0xff]
    %v165 = vld [vmem:[#allocation3 + $0x240] sm:$0xff]
    %v166 = vld [vmem:[#allocation3 + $0x248] sm:$0xff]
    %v167 = vld [vmem:[#allocation3 + $0x250] sm:$0xff]
    %v168 = vld [vmem:[#allocation3 + $0x258] sm:$0xff]
    %v169 = vld [vmem:[#allocation3 + $0x260] sm:$0xff]
    %v170 = vld [vmem:[#allocation3 + $0x268] sm:$0xff]
    %v171 = vld [vmem:[#allocation3 + $0x270] sm:$0xff]
    %v172 = vld [vmem:[#allocation3 + $0x278] sm:$0xff]
    %v173 = vld [vmem:[#allocation3 + $0x280] sm:$0xff]
    %v174 = vld [vmem:[#allocation3 + $0x288] sm:$0xff]
    %v175 = vld [vmem:[#allocation3 + $0x290] sm:$0xff]
    %v176 = vld [vmem:[#allocation3 + $0x298] sm:$0xff]
    %v177 = vld [vmem:[#allocation3 + $0x2a0] sm:$0xff]
    %v178 = vld [vmem:[#allocation3 + $0x2a8] sm:$0xff]
    %v179 = vld [vmem:[#allocation3 + $0x2b0] sm:$0xff]
    %v180 = vld [vmem:[#allocation3 + $0x2b8] sm:$0xff]
    %v181 = vld [vmem:[#allocation3 + $0x2c0] sm:$0xff]
    %v182 = vld [vmem:[#allocation3 + $0x2c8] sm:$0xff]
    %v183 = vld [vmem:[#allocation3 + $0x2d0] sm:$0xff]
    %v184 = vld [vmem:[#allocation3 + $0x2d8] sm:$0xff]
    %v185 = vld [vmem:[#allocation3 + $0x2e0] sm:$0xff]
    %v186 = vld [vmem:[#allocation3 + $0x2e8] sm:$0xff]
    %v187 = vld [vmem:[#allocation3 + $0x2f0] sm:$0xff]
    %v188 = vld [vmem:[#allocation3 + $0x2f8] sm:$0xff]
    %v189 = vld [vmem:[#allocation3 + $0x300] sm:$0xff]
    %v190 = vld [vmem:[#allocation3 + $0x308] sm:$0xff]
    %v191 = vld [vmem:[#allocation3 + $0x310] sm:$0xff]
    %v192 = vld [vmem:[#allocation3 + $0x318] sm:$0xff]
    %v193 = vld [vmem:[#allocation3 + $0x320] sm:$0xff]
    %v194 = vld [vmem:[#allocation3 + $0x328] sm:$0xff]
    %v195 = vld [vmem:[#allocation3 + $0x330] sm:$0xff]
    %v196 = vld [vmem:[#allocation3 + $0x338] sm:$0xff]
    %v197 = vld [vmem:[#allocation3 + $0x340] sm:$0xff]
    %v198 = vld [vmem:[#allocation3 + $0x348] sm:$0xff]
    %v199 = vld [vmem:[#allocation3 + $0x350] sm:$0xff]
    %v200 = vld [vmem:[#allocation3 + $0x358] sm:$0xff]
    %v201 = vld [vmem:[#allocation3 + $0x360] sm:$0xff]
    %v202 = vld [vmem:[#allocation3 + $0x368] sm:$0xff]
    %v203 = vld [vmem:[#allocation3 + $0x370] sm:$0xff]
    %v204 = vld [vmem:[#allocation3 + $0x378] sm:$0xff]
    %v205 = vld [vmem:[#allocation3 + $0x380] sm:$0xff]
    %v206 = vld [vmem:[#allocation3 + $0x388] sm:$0xff]
    %v207 = vld [vmem:[#allocation3 + $0x390] sm:$0xff]
    %v208 = vld [vmem:[#allocation3 + $0x398] sm:$0xff]
    %v209 = vld [vmem:[#allocation3 + $0x3a0] sm:$0xff]
    %v210 = vld [vmem:[#allocation3 + $0x3a8] sm:$0xff]
    %v211 = vld [vmem:[#allocation3 + $0x3b0] sm:$0xff]
    %v212 = vld [vmem:[#allocation3 + $0x3b8] sm:$0xff]
    %v213 = vld [vmem:[#allocation3 + $0x3c0] sm:$0xff]
    %v214 = vld [vmem:[#allocation3 + $0x3c8] sm:$0xff]
    %v215 = vld [vmem:[#allocation3 + $0x3d0] sm:$0xff]
    %v216 = vld [vmem:[#allocation3 + $0x3d8] sm:$0xff]
    %v217 = vld [vmem:[#allocation3 + $0x3e0] sm:$0xff]
    %v218 = vld [vmem:[#allocation3 + $0x3e8] sm:$0xff]
    %v219 = vld [vmem:[#allocation3 + $0x3f0] sm:$0xff]
    %v220 = vld [vmem:[#allocation3 + $0x3f8] sm:$0xff]
    %v221 = vld [vmem:[#allocation3 + $0x400] sm:$0xff]
    %v222 = vld [vmem:[#allocation3 + $0x408] sm:$0xff]
    %v223 = vld [vmem:[#allocation3 + $0x410] sm:$0xff]
    %v224 = vld [vmem:[#allocation3 + $0x418] sm:$0xff]
    %v225 = vld [vmem:[#allocation3 + $0x420] sm:$0xff]
    %v226 = vld [vmem:[#allocation3 + $0x428] sm:$0xff]
    %v227 = vld [vmem:[#allocation3 + $0x430] sm:$0xff]
    %v228 = vld [vmem:[#allocation3 + $0x438] sm:$0xff]
    %v229 = vld [vmem:[#allocation3 + $0x440] sm:$0xff]
    %v230 = vld [vmem:[#allocation3 + $0x448] sm:$0xff]
    %v231 = vld [vmem:[#allocation3 + $0x450] sm:$0xff]
    %v232 = vld [vmem:[#allocation3 + $0x458] sm:$0xff]
    %v233 = vld [vmem:[#allocation3 + $0x460] sm:$0xff]
    %v234 = vld [vmem:[#allocation3 + $0x468] sm:$0xff]
    %v235 = vld [vmem:[#allocation3 + $0x470] sm:$0xff]
    %v236 = vld [vmem:[#allocation3 + $0x478] sm:$0xff]
    %v237 = vld [vmem:[#allocation3 + $0x480] sm:$0xff]
    %v238 = vld [vmem:[#allocation3 + $0x488] sm:$0xff]
    %v239 = vld [vmem:[#allocation3 + $0x490] sm:$0xff]
    %v240 = vld [vmem:[#allocation3 + $0x498] sm:$0xff]
    %v241 = vld [vmem:[#allocation3 + $0x4a0] sm:$0xff]
    %v242 = vld [vmem:[#allocation3 + $0x4a8] sm:$0xff]
    %v243 = vld [vmem:[#allocation3 + $0x4b0] sm:$0xff]
    %v244 = vld [vmem:[#allocation3 + $0x4b8] sm:$0xff]
    %v245 = vld [vmem:[#allocation3 + $0x4c0] sm:$0xff]
    %v246 = vld [vmem:[#allocation3 + $0x4c8] sm:$0xff]
    %v247 = vld [vmem:[#allocation3 + $0x4d0] sm:$0xff]
    %v248 = vld [vmem:[#allocation3 + $0x4d8] sm:$0xff]
    %v249 = vld [vmem:[#allocation3 + $0x4e0] sm:$0xff]
    %v250 = vld [vmem:[#allocation3 + $0x4e8] sm:$0xff]
    %v251 = vld [vmem:[#allocation3 + $0x4f0] sm:$0xff]
    %v252 = vld [vmem:[#allocation3 + $0x4f8] sm:$0xff]
    %v253 = vld [vmem:[#allocation3 + $0x500] sm:$0xff]
    %v254 = vld [vmem:[#allocation3 + $0x508] sm:$0xff]
    %v255 = vld [vmem:[#allocation3 + $0x510] sm:$0xff]
    %v256 = vld [vmem:[#allocation3 + $0x518] sm:$0xff]
    %v257 = vld [vmem:[#allocation3 + $0x520] sm:$0xff]
    %v258 = vld [vmem:[#allocation3 + $0x528] sm:$0xff]
    %v259 = vld [vmem:[#allocation3 + $0x530] sm:$0xff]
    %v260 = vld [vmem:[#allocation3 + $0x538] sm:$0xff]
    %v261 = vld [vmem:[#allocation3 + $0x540] sm:$0xff]
    %v262 = vld [vmem:[#allocation3 + $0x548] sm:$0xff]
    %v263 = vld [vmem:[#allocation3 + $0x550] sm:$0xff]
    %v264 = vld [vmem:[#allocation3 + $0x558] sm:$0xff]
    %v265 = vld [vmem:[#allocation3 + $0x560] sm:$0xff]
    %v266 = vld [vmem:[#allocation3 + $0x568] sm:$0xff]
    %v267 = vld [vmem:[#allocation3 + $0x570] sm:$0xff]
    %v268 = vld [vmem:[#allocation3 + $0x578] sm:$0xff]
    %v269 = vld [vmem:[#allocation3 + $0x580] sm:$0xff]
    %v270 = vld [vmem:[#allocation3 + $0x588] sm:$0xff]
    %v271 = vld [vmem:[#allocation3 + $0x590] sm:$0xff]
    %v272 = vld [vmem:[#allocation3 + $0x598] sm:$0xff]
    %v273 = vld [vmem:[#allocation3 + $0x5a0] sm:$0xff]
    %v274 = vld [vmem:[#allocation3 + $0x5a8] sm:$0xff]
    %v275 = vld [vmem:[#allocation3 + $0x5b0] sm:$0xff]
    %v276 = vld [vmem:[#allocation3 + $0x5b8] sm:$0xff]
    %v277 = vld [vmem:[#allocation3 + $0x5c0] sm:$0xff]
    %v278 = vld [vmem:[#allocation3 + $0x5c8] sm:$0xff]
    %v279 = vld [vmem:[#allocation3 + $0x5d0] sm:$0xff]
    %v280 = vld [vmem:[#allocation3 + $0x5d8] sm:$0xff]
    %v281 = vld [vmem:[#allocation3 + $0x5e0] sm:$0xff]
    %v282 = vld [vmem:[#allocation3 + $0x5e8] sm:$0xff]
    %v283 = vld [vmem:[#allocation3 + $0x5f0] sm:$0xff]
    %v284 = vld [vmem:[#allocation3 + $0x5f8] sm:$0xff]
    %v285 = vld [vmem:[#allocation3 + $0x600] sm:$0xff]
    %v286 = vld [vmem:[#allocation3 + $0x608] sm:$0xff]
    %v287 = vld [vmem:[#allocation3 + $0x610] sm:$0xff]
    %v288 = vld [vmem:[#allocation3 + $0x618] sm:$0xff]
    %v289 = vld [vmem:[#allocation3 + $0x620] sm:$0xff]
    %v290 = vld [vmem:[#allocation3 + $0x628] sm:$0xff]
    %v291 = vld [vmem:[#allocation3 + $0x630] sm:$0xff]
    %v292 = vld [vmem:[#allocation3 + $0x638] sm:$0xff]
    %v293 = vld [vmem:[#allocation3 + $0x640] sm:$0xff]
    %v294 = vld [vmem:[#allocation3 + $0x648] sm:$0xff]
    %v295 = vld [vmem:[#allocation3 + $0x650] sm:$0xff]
    %v296 = vld [vmem:[#allocation3 + $0x658] sm:$0xff]
    %v297 = vld [vmem:[#allocation3 + $0x660] sm:$0xff]
    %v298 = vld [vmem:[#allocation3 + $0x668] sm:$0xff]
    %v299 = vld [vmem:[#allocation3 + $0x670] sm:$0xff]
    %v300 = vld [vmem:[#allocation3 + $0x678] sm:$0xff]
    %v301 = vld [vmem:[#allocation3 + $0x680] sm:$0xff]
    %v302 = vld [vmem:[#allocation3 + $0x688] sm:$0xff]
    %v303 = vld [vmem:[#allocation3 + $0x690] sm:$0xff]
    %v304 = vld [vmem:[#allocation3 + $0x698] sm:$0xff]
    %v305 = vld [vmem:[#allocation3 + $0x6a0] sm:$0xff]
    %v306 = vld [vmem:[#allocation3 + $0x6a8] sm:$0xff]
    %v307 = vld [vmem:[#allocation3 + $0x6b0] sm:$0xff]
    %v308 = vld [vmem:[#allocation3 + $0x6b8] sm:$0xff]
    %v309 = vld [vmem:[#allocation3 + $0x6c0] sm:$0xff]
    %v310 = vld [vmem:[#allocation3 + $0x6c8] sm:$0xff]
    %v311 = vld [vmem:[#allocation3 + $0x6d0] sm:$0xff]
    %v312 = vld [vmem:[#allocation3 + $0x6d8] sm:$0xff]
    %v313 = vld [vmem:[#allocation3 + $0x6e0] sm:$0xff]
    %v314 = vld [vmem:[#allocation3 + $0x6e8] sm:$0xff]
    %v315 = vld [vmem:[#allocation3 + $0x6f0] sm:$0xff]
    %v316 = vld [vmem:[#allocation3 + $0x6f8] sm:$0xff]
    %v317 = vld [vmem:[#allocation3 + $0x700] sm:$0xff]
    %v318 = vld [vmem:[#allocation3 + $0x708] sm:$0xff]
    %v319 = vld [vmem:[#allocation3 + $0x710] sm:$0xff]
    %v320 = vld [vmem:[#allocation3 + $0x718] sm:$0xff]
    %v321 = vld [vmem:[#allocation3 + $0x720] sm:$0xff]
    %v322 = vld [vmem:[#allocation3 + $0x728] sm:$0xff]
    %v323 = vld [vmem:[#allocation3 + $0x730] sm:$0xff]
    %v324 = vld [vmem:[#allocation3 + $0x738] sm:$0xff]
    %v325 = vld [vmem:[#allocation3 + $0x740] sm:$0xff]
    %v326 = vld [vmem:[#allocation3 + $0x748] sm:$0xff]
    %v327 = vld [vmem:[#allocation3 + $0x750] sm:$0xff]
    %v328 = vld [vmem:[#allocation3 + $0x758] sm:$0xff]
    %v329 = vld [vmem:[#allocation3 + $0x760] sm:$0xff]
    %v330 = vld [vmem:[#allocation3 + $0x768] sm:$0xff]
    %v331 = vld [vmem:[#allocation3 + $0x770] sm:$0xff]
    %v332 = vld [vmem:[#allocation3 + $0x778] sm:$0xff]
    %v333 = vld [vmem:[#allocation3 + $0x780] sm:$0xff]
    %v334 = vld [vmem:[#allocation3 + $0x788] sm:$0xff]
    %v335 = vld [vmem:[#allocation3 + $0x790] sm:$0xff]
    %v336 = vld [vmem:[#allocation3 + $0x798] sm:$0xff]
    %v337 = vld [vmem:[#allocation3 + $0x7a0] sm:$0xff]
    %v338 = vld [vmem:[#allocation3 + $0x7a8] sm:$0xff]
    %v339 = vld [vmem:[#allocation3 + $0x7b0] sm:$0xff]
    %v340 = vld [vmem:[#allocation3 + $0x7b8] sm:$0xff]
    %v341 = vld [vmem:[#allocation3 + $0x7c0] sm:$0xff]
    %v342 = vld [vmem:[#allocation3 + $0x7c8] sm:$0xff]
    %v343 = vld [vmem:[#allocation3 + $0x7d0] sm:$0xff]
    %v344 = vld [vmem:[#allocation3 + $0x7d8] sm:$0xff]
    %v345 = vld [vmem:[#allocation3 + $0x7e0] sm:$0xff]
    %v346 = vld [vmem:[#allocation3 + $0x7e8] sm:$0xff]
    %v347 = vld [vmem:[#allocation3 + $0x7f0] sm:$0xff]
    %v348 = vld [vmem:[#allocation3 + $0x7f8] sm:$0xff]
    %v349 = vld [vmem:[#allocation3 + $0x800] sm:$0xff]
    %v350 = vld [vmem:[#allocation3 + $0x808] sm:$0xff]
    %v351 = vld [vmem:[#allocation3 + $0x810] sm:$0xff]
    %v352 = vld [vmem:[#allocation3 + $0x818] sm:$0xff]
    %v353 = vld [vmem:[#allocation3 + $0x820] sm:$0xff]
    %v354 = vld [vmem:[#allocation3 + $0x828] sm:$0xff]
    %v355 = vld [vmem:[#allocation3 + $0x830] sm:$0xff]
    %v356 = vld [vmem:[#allocation3 + $0x838] sm:$0xff]
    %v357 = vld [vmem:[#allocation3 + $0x840] sm:$0xff]
    %v358 = vld [vmem:[#allocation3 + $0x848] sm:$0xff]
    %v359 = vld [vmem:[#allocation3 + $0x850] sm:$0xff]
    %v360 = vld [vmem:[#allocation3 + $0x858] sm:$0xff]
    %v361 = vld [vmem:[#allocation3 + $0x860] sm:$0xff]
    %v362 = vld [vmem:[#allocation3 + $0x868] sm:$0xff]
    %v363 = vld [vmem:[#allocation3 + $0x870] sm:$0xff]
    %v364 = vld [vmem:[#allocation3 + $0x878] sm:$0xff]
    %v365 = vld [vmem:[#allocation3 + $0x880] sm:$0xff]
    %v366 = vld [vmem:[#allocation3 + $0x888] sm:$0xff]
    %v367 = vld [vmem:[#allocation3 + $0x890] sm:$0xff]
    %v368 = vld [vmem:[#allocation3 + $0x898] sm:$0xff]
    %v369 = vld [vmem:[#allocation3 + $0x8a0] sm:$0xff]
    %v370 = vld [vmem:[#allocation3 + $0x8a8] sm:$0xff]
    %v371 = vld [vmem:[#allocation3 + $0x8b0] sm:$0xff]
    %v372 = vld [vmem:[#allocation3 + $0x8b8] sm:$0xff]
    %v373 = vld [vmem:[#allocation3 + $0x8c0] sm:$0xff]
    %v374 = vld [vmem:[#allocation3 + $0x8c8] sm:$0xff]
    %v375 = vld [vmem:[#allocation3 + $0x8d0] sm:$0xff]
    %v376 = vld [vmem:[#allocation3 + $0x8d8] sm:$0xff]
    %v377 = vld [vmem:[#allocation3 + $0x8e0] sm:$0xff]
    %v378 = vld [vmem:[#allocation3 + $0x8e8] sm:$0xff]
    %v379 = vld [vmem:[#allocation3 + $0x8f0] sm:$0xff]
    %v380 = vld [vmem:[#allocation3 + $0x8f8] sm:$0xff]
    %v381 = vld [vmem:[#allocation5] sm:$0x3f]
    %v383 = vlaneseq
    %v384 = vshrl.u32 %v383, 7
    %v385 = vsub.s32 0, %v384
    %v386 = vrot.slane %v381, %v385
    %v387 = vlaneseq
    %v388 = vshrl.u32 %v387, 7
    %v389 = vsub.s32 1, %v388
    %v390 = vrot.slane %v381, %v389
    %v391 = vlaneseq
    %v392 = vshrl.u32 %v391, 7
    %v393 = vsub.s32 2, %v392
    %v394 = vrot.slane %v381, %v393
    %v395 = vlaneseq
    %v396 = vshrl.u32 %v395, 7
    %v397 = vsub.s32 3, %v396
    %v398 = vrot.slane %v381, %v397
    %v399 = vlaneseq
    %v400 = vshrl.u32 %v399, 7
    %v401 = vsub.s32 4, %v400
    %v402 = vrot.slane %v381, %v401
    %v403 = vlaneseq
    %v404 = vshrl.u32 %v403, 7
    %v405 = vsub.s32 5, %v404
    %v406 = vrot.slane %v381, %v405
    %v416 = vunpack.c.l.b16 %v90
    %v417 = vunpack.c.h.b16 %v90
    %v418 = vunpack.c.l.b16 %v91
    %v419 = vunpack.c.h.b16 %v91
    %v420 = vunpack.c.l.b16 %v92
    %v421 = vunpack.c.h.b16 %v92
    %v422 = vpack.c.b16 %v416, %v416
    %v423 = vpack.c.b16 %v417, %v417
    %v424 = vpack.c.b16 %v418, %v418
    %v425 = vpack.c.b16 %v419, %v419
    %v426 = vpack.c.b16 %v420, %v420
    %v427 = vpack.c.b16 %v421, %v421
    %v722 = vunpack.c.l.b16 %v93
    %v723 = vunpack.c.h.b16 %v93
    %v724 = vunpack.c.l.b16 %v94
    %v725 = vunpack.c.h.b16 %v94
    %v726 = vunpack.c.l.b16 %v95
    %v727 = vunpack.c.h.b16 %v95
    %v728 = vunpack.c.l.b16 %v96
    %v729 = vunpack.c.h.b16 %v96
    %v730 = vunpack.c.l.b16 %v97
    %v731 = vunpack.c.h.b16 %v97
    %v732 = vunpack.c.l.b16 %v98
    %v733 = vunpack.c.h.b16 %v98
    %v734 = vunpack.c.l.b16 %v99
    %v735 = vunpack.c.h.b16 %v99
    %v736 = vunpack.c.l.b16 %v100
    %v737 = vunpack.c.h.b16 %v100
    %v738 = vunpack.c.l.b16 %v101
    %v739 = vunpack.c.h.b16 %v101
    %v740 = vunpack.c.l.b16 %v102
    %v741 = vunpack.c.h.b16 %v102
    %v742 = vunpack.c.l.b16 %v103
    %v743 = vunpack.c.h.b16 %v103
    %v744 = vunpack.c.l.b16 %v104
    %v745 = vunpack.c.h.b16 %v104
    %v746 = vunpack.c.l.b16 %v105
    %v747 = vunpack.c.h.b16 %v105
    %v748 = vunpack.c.l.b16 %v106
    %v749 = vunpack.c.h.b16 %v106
    %v750 = vunpack.c.l.b16 %v107
    %v751 = vunpack.c.h.b16 %v107
    %v752 = vunpack.c.l.b16 %v108
    %v753 = vunpack.c.h.b16 %v108
    %v754 = vunpack.c.l.b16 %v109
    %v755 = vunpack.c.h.b16 %v109
    %v756 = vunpack.c.l.b16 %v110
    %v757 = vunpack.c.h.b16 %v110
    %v758 = vunpack.c.l.b16 %v111
    %v759 = vunpack.c.h.b16 %v111
    %v760 = vunpack.c.l.b16 %v112
    %v761 = vunpack.c.h.b16 %v112
    %v762 = vunpack.c.l.b16 %v113
    %v763 = vunpack.c.h.b16 %v113
    %v764 = vunpack.c.l.b16 %v114
    %v765 = vunpack.c.h.b16 %v114
    %v766 = vunpack.c.l.b16 %v115
    %v767 = vunpack.c.h.b16 %v115
    %v768 = vunpack.c.l.b16 %v116
    %v769 = vunpack.c.h.b16 %v116
    %v770 = vunpack.c.l.b16 %v117
    %v771 = vunpack.c.h.b16 %v117
    %v772 = vunpack.c.l.b16 %v118
    %v773 = vunpack.c.h.b16 %v118
    %v774 = vunpack.c.l.b16 %v119
    %v775 = vunpack.c.h.b16 %v119
    %v776 = vunpack.c.l.b16 %v120
    %v777 = vunpack.c.h.b16 %v120
    %v778 = vunpack.c.l.b16 %v121
    %v779 = vunpack.c.h.b16 %v121
    %v780 = vunpack.c.l.b16 %v122
    %v781 = vunpack.c.h.b16 %v122
    %v782 = vunpack.c.l.b16 %v123
    %v783 = vunpack.c.h.b16 %v123
    %v784 = vunpack.c.l.b16 %v124
    %v785 = vunpack.c.h.b16 %v124
    %v786 = vunpack.c.l.b16 %v125
    %v787 = vunpack.c.h.b16 %v125
    %v788 = vunpack.c.l.b16 %v126
    %v789 = vunpack.c.h.b16 %v126
    %v790 = vunpack.c.l.b16 %v127
    %v791 = vunpack.c.h.b16 %v127
    %v792 = vunpack.c.l.b16 %v128
    %v793 = vunpack.c.h.b16 %v128
    %v794 = vunpack.c.l.b16 %v129
    %v795 = vunpack.c.h.b16 %v129
    %v796 = vunpack.c.l.b16 %v130
    %v797 = vunpack.c.h.b16 %v130
    %v798 = vunpack.c.l.b16 %v131
    %v799 = vunpack.c.h.b16 %v131
    %v800 = vunpack.c.l.b16 %v132
    %v801 = vunpack.c.h.b16 %v132
    %v802 = vunpack.c.l.b16 %v133
    %v803 = vunpack.c.h.b16 %v133
    %v804 = vunpack.c.l.b16 %v134
    %v805 = vunpack.c.h.b16 %v134
    %v806 = vunpack.c.l.b16 %v135
    %v807 = vunpack.c.h.b16 %v135
    %v808 = vunpack.c.l.b16 %v136
    %v809 = vunpack.c.h.b16 %v136
    %v810 = vunpack.c.l.b16 %v137
    %v811 = vunpack.c.h.b16 %v137
    %v812 = vunpack.c.l.b16 %v138
    %v813 = vunpack.c.h.b16 %v138
    %v814 = vunpack.c.l.b16 %v139
    %v815 = vunpack.c.h.b16 %v139
    %v816 = vunpack.c.l.b16 %v140
    %v817 = vunpack.c.h.b16 %v140
    %v818 = vunpack.c.l.b16 %v141
    %v819 = vunpack.c.h.b16 %v141
    %v820 = vunpack.c.l.b16 %v142
    %v821 = vunpack.c.h.b16 %v142
    %v822 = vunpack.c.l.b16 %v143
    %v823 = vunpack.c.h.b16 %v143
    %v824 = vunpack.c.l.b16 %v144
    %v825 = vunpack.c.h.b16 %v144
    %v826 = vunpack.c.l.b16 %v145
    %v827 = vunpack.c.h.b16 %v145
    %v828 = vunpack.c.l.b16 %v146
    %v829 = vunpack.c.h.b16 %v146
    %v830 = vunpack.c.l.b16 %v147
    %v831 = vunpack.c.h.b16 %v147
    %v832 = vunpack.c.l.b16 %v148
    %v833 = vunpack.c.h.b16 %v148
    %v834 = vunpack.c.l.b16 %v149
    %v835 = vunpack.c.h.b16 %v149
    %v836 = vunpack.c.l.b16 %v150
    %v837 = vunpack.c.h.b16 %v150
    %v838 = vunpack.c.l.b16 %v151
    %v839 = vunpack.c.h.b16 %v151
    %v840 = vunpack.c.l.b16 %v152
    %v841 = vunpack.c.h.b16 %v152
    %v842 = vunpack.c.l.b16 %v153
    %v843 = vunpack.c.h.b16 %v153
    %v844 = vunpack.c.l.b16 %v154
    %v845 = vunpack.c.h.b16 %v154
    %v846 = vunpack.c.l.b16 %v155
    %v847 = vunpack.c.h.b16 %v155
    %v848 = vunpack.c.l.b16 %v156
    %v849 = vunpack.c.h.b16 %v156
    %v850 = vunpack.c.l.b16 %v157
    %v851 = vunpack.c.h.b16 %v157
    %v852 = vunpack.c.l.b16 %v158
    %v853 = vunpack.c.h.b16 %v158
    %v854 = vunpack.c.l.b16 %v159
    %v855 = vunpack.c.h.b16 %v159
    %v856 = vunpack.c.l.b16 %v160
    %v857 = vunpack.c.h.b16 %v160
    %v858 = vunpack.c.l.b16 %v161
    %v859 = vunpack.c.h.b16 %v161
    %v860 = vunpack.c.l.b16 %v162
    %v861 = vunpack.c.h.b16 %v162
    %v862 = vunpack.c.l.b16 %v163
    %v863 = vunpack.c.h.b16 %v163
    %v864 = vunpack.c.l.b16 %v164
    %v865 = vunpack.c.h.b16 %v164
    %v866 = vunpack.c.l.b16 %v165
    %v867 = vunpack.c.h.b16 %v165
    %v868 = vunpack.c.l.b16 %v166
    %v869 = vunpack.c.h.b16 %v166
    %v870 = vunpack.c.l.b16 %v167
    %v871 = vunpack.c.h.b16 %v167
    %v872 = vunpack.c.l.b16 %v168
    %v873 = vunpack.c.h.b16 %v168
    %v874 = vunpack.c.l.b16 %v169
    %v875 = vunpack.c.h.b16 %v169
    %v876 = vunpack.c.l.b16 %v170
    %v877 = vunpack.c.h.b16 %v170
    %v878 = vunpack.c.l.b16 %v171
    %v879 = vunpack.c.h.b16 %v171
    %v880 = vunpack.c.l.b16 %v172
    %v881 = vunpack.c.h.b16 %v172
    %v882 = vunpack.c.l.b16 %v173
    %v883 = vunpack.c.h.b16 %v173
    %v884 = vunpack.c.l.b16 %v174
    %v885 = vunpack.c.h.b16 %v174
    %v886 = vunpack.c.l.b16 %v175
    %v887 = vunpack.c.h.b16 %v175
    %v888 = vunpack.c.l.b16 %v176
    %v889 = vunpack.c.h.b16 %v176
    %v890 = vunpack.c.l.b16 %v177
    %v891 = vunpack.c.h.b16 %v177
    %v892 = vunpack.c.l.b16 %v178
    %v893 = vunpack.c.h.b16 %v178
    %v894 = vunpack.c.l.b16 %v179
    %v895 = vunpack.c.h.b16 %v179
    %v896 = vunpack.c.l.b16 %v180
    %v897 = vunpack.c.h.b16 %v180
    %v898 = vunpack.c.l.b16 %v181
    %v899 = vunpack.c.h.b16 %v181
    %v900 = vunpack.c.l.b16 %v182
    %v901 = vunpack.c.h.b16 %v182
    %v902 = vunpack.c.l.b16 %v183
    %v903 = vunpack.c.h.b16 %v183
    %v904 = vunpack.c.l.b16 %v184
    %v905 = vunpack.c.h.b16 %v184
    %v906 = vunpack.c.l.b16 %v185
    %v907 = vunpack.c.h.b16 %v185
    %v908 = vunpack.c.l.b16 %v186
    %v909 = vunpack.c.h.b16 %v186
    %v910 = vunpack.c.l.b16 %v187
    %v911 = vunpack.c.h.b16 %v187
    %v912 = vunpack.c.l.b16 %v188
    %v913 = vunpack.c.h.b16 %v188
    %v914 = vunpack.c.l.b16 %v189
    %v915 = vunpack.c.h.b16 %v189
    %v916 = vunpack.c.l.b16 %v190
    %v917 = vunpack.c.h.b16 %v190
    %v918 = vunpack.c.l.b16 %v191
    %v919 = vunpack.c.h.b16 %v191
    %v920 = vunpack.c.l.b16 %v192
    %v921 = vunpack.c.h.b16 %v192
    %v922 = vunpack.c.l.b16 %v193
    %v923 = vunpack.c.h.b16 %v193
    %v924 = vunpack.c.l.b16 %v194
    %v925 = vunpack.c.h.b16 %v194
    %v926 = vunpack.c.l.b16 %v195
    %v927 = vunpack.c.h.b16 %v195
    %v928 = vunpack.c.l.b16 %v196
    %v929 = vunpack.c.h.b16 %v196
    %v930 = vunpack.c.l.b16 %v197
    %v931 = vunpack.c.h.b16 %v197
    %v932 = vunpack.c.l.b16 %v198
    %v933 = vunpack.c.h.b16 %v198
    %v934 = vunpack.c.l.b16 %v199
    %v935 = vunpack.c.h.b16 %v199
    %v936 = vunpack.c.l.b16 %v200
    %v937 = vunpack.c.h.b16 %v200
    %v938 = vunpack.c.l.b16 %v201
    %v939 = vunpack.c.h.b16 %v201
    %v940 = vunpack.c.l.b16 %v202
    %v941 = vunpack.c.h.b16 %v202
    %v942 = vunpack.c.l.b16 %v203
    %v943 = vunpack.c.h.b16 %v203
    %v944 = vunpack.c.l.b16 %v204
    %v945 = vunpack.c.h.b16 %v204
    %v946 = vunpack.c.l.b16 %v205
    %v947 = vunpack.c.h.b16 %v205
    %v948 = vunpack.c.l.b16 %v206
    %v949 = vunpack.c.h.b16 %v206
    %v950 = vunpack.c.l.b16 %v207
    %v951 = vunpack.c.h.b16 %v207
    %v952 = vunpack.c.l.b16 %v208
    %v953 = vunpack.c.h.b16 %v208
    %v954 = vunpack.c.l.b16 %v209
    %v955 = vunpack.c.h.b16 %v209
    %v956 = vunpack.c.l.b16 %v210
    %v957 = vunpack.c.h.b16 %v210
    %v958 = vunpack.c.l.b16 %v211
    %v959 = vunpack.c.h.b16 %v211
    %v960 = vunpack.c.l.b16 %v212
    %v961 = vunpack.c.h.b16 %v212
    %v962 = vunpack.c.l.b16 %v213
    %v963 = vunpack.c.h.b16 %v213
    %v964 = vunpack.c.l.b16 %v214
    %v965 = vunpack.c.h.b16 %v214
    %v966 = vunpack.c.l.b16 %v215
    %v967 = vunpack.c.h.b16 %v215
    %v968 = vunpack.c.l.b16 %v216
    %v969 = vunpack.c.h.b16 %v216
    %v970 = vunpack.c.l.b16 %v217
    %v971 = vunpack.c.h.b16 %v217
    %v972 = vunpack.c.l.b16 %v218
    %v973 = vunpack.c.h.b16 %v218
    %v974 = vunpack.c.l.b16 %v219
    %v975 = vunpack.c.h.b16 %v219
    %v976 = vunpack.c.l.b16 %v220
    %v977 = vunpack.c.h.b16 %v220
    %v978 = vunpack.c.l.b16 %v221
    %v979 = vunpack.c.h.b16 %v221
    %v980 = vunpack.c.l.b16 %v222
    %v981 = vunpack.c.h.b16 %v222
    %v982 = vunpack.c.l.b16 %v223
    %v983 = vunpack.c.h.b16 %v223
    %v984 = vunpack.c.l.b16 %v224
    %v985 = vunpack.c.h.b16 %v224
    %v986 = vunpack.c.l.b16 %v225
    %v987 = vunpack.c.h.b16 %v225
    %v988 = vunpack.c.l.b16 %v226
    %v989 = vunpack.c.h.b16 %v226
    %v990 = vunpack.c.l.b16 %v227
    %v991 = vunpack.c.h.b16 %v227
    %v992 = vunpack.c.l.b16 %v228
    %v993 = vunpack.c.h.b16 %v228
    %v994 = vunpack.c.l.b16 %v229
    %v995 = vunpack.c.h.b16 %v229
    %v996 = vunpack.c.l.b16 %v230
    %v997 = vunpack.c.h.b16 %v230
    %v998 = vunpack.c.l.b16 %v231
    %v999 = vunpack.c.h.b16 %v231
    %v1000 = vunpack.c.l.b16 %v232
    %v1001 = vunpack.c.h.b16 %v232
    %v1002 = vunpack.c.l.b16 %v233
    %v1003 = vunpack.c.h.b16 %v233
    %v1004 = vunpack.c.l.b16 %v234
    %v1005 = vunpack.c.h.b16 %v234
    %v1006 = vunpack.c.l.b16 %v235
    %v1007 = vunpack.c.h.b16 %v235
    %v1008 = vunpack.c.l.b16 %v236
    %v1009 = vunpack.c.h.b16 %v236
    %v1010 = vunpack.c.l.b16 %v237
    %v1011 = vunpack.c.h.b16 %v237
    %v1012 = vunpack.c.l.b16 %v238
    %v1013 = vunpack.c.h.b16 %v238
    %v1014 = vunpack.c.l.b16 %v239
    %v1015 = vunpack.c.h.b16 %v239
    %v1016 = vunpack.c.l.b16 %v240
    %v1017 = vunpack.c.h.b16 %v240
    %v1018 = vunpack.c.l.b16 %v241
    %v1019 = vunpack.c.h.b16 %v241
    %v1020 = vunpack.c.l.b16 %v242
    %v1021 = vunpack.c.h.b16 %v242
    %v1022 = vunpack.c.l.b16 %v243
    %v1023 = vunpack.c.h.b16 %v243
    %v1024 = vunpack.c.l.b16 %v244
    %v1025 = vunpack.c.h.b16 %v244
    %v1026 = vunpack.c.l.b16 %v245
    %v1027 = vunpack.c.h.b16 %v245
    %v1028 = vunpack.c.l.b16 %v246
    %v1029 = vunpack.c.h.b16 %v246
    %v1030 = vunpack.c.l.b16 %v247
    %v1031 = vunpack.c.h.b16 %v247
    %v1032 = vunpack.c.l.b16 %v248
    %v1033 = vunpack.c.h.b16 %v248
    %v1034 = vunpack.c.l.b16 %v249
    %v1035 = vunpack.c.h.b16 %v249
    %v1036 = vunpack.c.l.b16 %v250
    %v1037 = vunpack.c.h.b16 %v250
    %v1038 = vunpack.c.l.b16 %v251
    %v1039 = vunpack.c.h.b16 %v251
    %v1040 = vunpack.c.l.b16 %v252
    %v1041 = vunpack.c.h.b16 %v252
    %v1042 = vunpack.c.l.b16 %v253
    %v1043 = vunpack.c.h.b16 %v253
    %v1044 = vunpack.c.l.b16 %v254
    %v1045 = vunpack.c.h.b16 %v254
    %v1046 = vunpack.c.l.b16 %v255
    %v1047 = vunpack.c.h.b16 %v255
    %v1048 = vunpack.c.l.b16 %v256
    %v1049 = vunpack.c.h.b16 %v256
    %v1050 = vunpack.c.l.b16 %v257
    %v1051 = vunpack.c.h.b16 %v257
    %v1052 = vunpack.c.l.b16 %v258
    %v1053 = vunpack.c.h.b16 %v258
    %v1054 = vunpack.c.l.b16 %v259
    %v1055 = vunpack.c.h.b16 %v259
    %v1056 = vunpack.c.l.b16 %v260
    %v1057 = vunpack.c.h.b16 %v260
    %v1058 = vunpack.c.l.b16 %v261
    %v1059 = vunpack.c.h.b16 %v261
    %v1060 = vunpack.c.l.b16 %v262
    %v1061 = vunpack.c.h.b16 %v262
    %v1062 = vunpack.c.l.b16 %v263
    %v1063 = vunpack.c.h.b16 %v263
    %v1064 = vunpack.c.l.b16 %v264
    %v1065 = vunpack.c.h.b16 %v264
    %v1066 = vunpack.c.l.b16 %v265
    %v1067 = vunpack.c.h.b16 %v265
    %v1068 = vunpack.c.l.b16 %v266
    %v1069 = vunpack.c.h.b16 %v266
    %v1070 = vunpack.c.l.b16 %v267
    %v1071 = vunpack.c.h.b16 %v267
    %v1072 = vunpack.c.l.b16 %v268
    %v1073 = vunpack.c.h.b16 %v268
    %v1074 = vunpack.c.l.b16 %v269
    %v1075 = vunpack.c.h.b16 %v269
    %v1076 = vunpack.c.l.b16 %v270
    %v1077 = vunpack.c.h.b16 %v270
    %v1078 = vunpack.c.l.b16 %v271
    %v1079 = vunpack.c.h.b16 %v271
    %v1080 = vunpack.c.l.b16 %v272
    %v1081 = vunpack.c.h.b16 %v272
    %v1082 = vunpack.c.l.b16 %v273
    %v1083 = vunpack.c.h.b16 %v273
    %v1084 = vunpack.c.l.b16 %v274
    %v1085 = vunpack.c.h.b16 %v274
    %v1086 = vunpack.c.l.b16 %v275
    %v1087 = vunpack.c.h.b16 %v275
    %v1088 = vunpack.c.l.b16 %v276
    %v1089 = vunpack.c.h.b16 %v276
    %v1090 = vunpack.c.l.b16 %v277
    %v1091 = vunpack.c.h.b16 %v277
    %v1092 = vunpack.c.l.b16 %v278
    %v1093 = vunpack.c.h.b16 %v278
    %v1094 = vunpack.c.l.b16 %v279
    %v1095 = vunpack.c.h.b16 %v279
    %v1096 = vunpack.c.l.b16 %v280
    %v1097 = vunpack.c.h.b16 %v280
    %v1098 = vunpack.c.l.b16 %v281
    %v1099 = vunpack.c.h.b16 %v281
    %v1100 = vunpack.c.l.b16 %v282
    %v1101 = vunpack.c.h.b16 %v282
    %v1102 = vunpack.c.l.b16 %v283
    %v1103 = vunpack.c.h.b16 %v283
    %v1104 = vunpack.c.l.b16 %v284
    %v1105 = vunpack.c.h.b16 %v284
    %v1106 = vunpack.c.l.b16 %v285
    %v1107 = vunpack.c.h.b16 %v285
    %v1108 = vunpack.c.l.b16 %v286
    %v1109 = vunpack.c.h.b16 %v286
    %v1110 = vunpack.c.l.b16 %v287
    %v1111 = vunpack.c.h.b16 %v287
    %v1112 = vunpack.c.l.b16 %v288
    %v1113 = vunpack.c.h.b16 %v288
    %v1114 = vunpack.c.l.b16 %v289
    %v1115 = vunpack.c.h.b16 %v289
    %v1116 = vunpack.c.l.b16 %v290
    %v1117 = vunpack.c.h.b16 %v290
    %v1118 = vunpack.c.l.b16 %v291
    %v1119 = vunpack.c.h.b16 %v291
    %v1120 = vunpack.c.l.b16 %v292
    %v1121 = vunpack.c.h.b16 %v292
    %v1122 = vunpack.c.l.b16 %v293
    %v1123 = vunpack.c.h.b16 %v293
    %v1124 = vunpack.c.l.b16 %v294
    %v1125 = vunpack.c.h.b16 %v294
    %v1126 = vunpack.c.l.b16 %v295
    %v1127 = vunpack.c.h.b16 %v295
    %v1128 = vunpack.c.l.b16 %v296
    %v1129 = vunpack.c.h.b16 %v296
    %v1130 = vunpack.c.l.b16 %v297
    %v1131 = vunpack.c.h.b16 %v297
    %v1132 = vunpack.c.l.b16 %v298
    %v1133 = vunpack.c.h.b16 %v298
    %v1134 = vunpack.c.l.b16 %v299
    %v1135 = vunpack.c.h.b16 %v299
    %v1136 = vunpack.c.l.b16 %v300
    %v1137 = vunpack.c.h.b16 %v300
    %v1138 = vunpack.c.l.b16 %v301
    %v1139 = vunpack.c.h.b16 %v301
    %v1140 = vunpack.c.l.b16 %v302
    %v1141 = vunpack.c.h.b16 %v302
    %v1142 = vunpack.c.l.b16 %v303
    %v1143 = vunpack.c.h.b16 %v303
    %v1144 = vunpack.c.l.b16 %v304
    %v1145 = vunpack.c.h.b16 %v304
    %v1146 = vunpack.c.l.b16 %v305
    %v1147 = vunpack.c.h.b16 %v305
    %v1148 = vunpack.c.l.b16 %v306
    %v1149 = vunpack.c.h.b16 %v306
    %v1150 = vunpack.c.l.b16 %v307
    %v1151 = vunpack.c.h.b16 %v307
    %v1152 = vunpack.c.l.b16 %v308
    %v1153 = vunpack.c.h.b16 %v308
    %v1154 = vunpack.c.l.b16 %v309
    %v1155 = vunpack.c.h.b16 %v309
    %v1156 = vunpack.c.l.b16 %v310
    %v1157 = vunpack.c.h.b16 %v310
    %v1158 = vunpack.c.l.b16 %v311
    %v1159 = vunpack.c.h.b16 %v311
    %v1160 = vunpack.c.l.b16 %v312
    %v1161 = vunpack.c.h.b16 %v312
    %v1162 = vunpack.c.l.b16 %v313
    %v1163 = vunpack.c.h.b16 %v313
    %v1164 = vunpack.c.l.b16 %v314
    %v1165 = vunpack.c.h.b16 %v314
    %v1166 = vunpack.c.l.b16 %v315
    %v1167 = vunpack.c.h.b16 %v315
    %v1168 = vunpack.c.l.b16 %v316
    %v1169 = vunpack.c.h.b16 %v316
    %v1170 = vunpack.c.l.b16 %v317
    %v1171 = vunpack.c.h.b16 %v317
    %v1172 = vunpack.c.l.b16 %v318
    %v1173 = vunpack.c.h.b16 %v318
    %v1174 = vunpack.c.l.b16 %v319
    %v1175 = vunpack.c.h.b16 %v319
    %v1176 = vunpack.c.l.b16 %v320
    %v1177 = vunpack.c.h.b16 %v320
    %v1178 = vunpack.c.l.b16 %v321
    %v1179 = vunpack.c.h.b16 %v321
    %v1180 = vunpack.c.l.b16 %v322
    %v1181 = vunpack.c.h.b16 %v322
    %v1182 = vunpack.c.l.b16 %v323
    %v1183 = vunpack.c.h.b16 %v323
    %v1184 = vunpack.c.l.b16 %v324
    %v1185 = vunpack.c.h.b16 %v324
    %v1186 = vunpack.c.l.b16 %v325
    %v1187 = vunpack.c.h.b16 %v325
    %v1188 = vunpack.c.l.b16 %v326
    %v1189 = vunpack.c.h.b16 %v326
    %v1190 = vunpack.c.l.b16 %v327
    %v1191 = vunpack.c.h.b16 %v327
    %v1192 = vunpack.c.l.b16 %v328
    %v1193 = vunpack.c.h.b16 %v328
    %v1194 = vunpack.c.l.b16 %v329
    %v1195 = vunpack.c.h.b16 %v329
    %v1196 = vunpack.c.l.b16 %v330
    %v1197 = vunpack.c.h.b16 %v330
    %v1198 = vunpack.c.l.b16 %v331
    %v1199 = vunpack.c.h.b16 %v331
    %v1200 = vunpack.c.l.b16 %v332
    %v1201 = vunpack.c.h.b16 %v332
    %v1202 = vunpack.c.l.b16 %v333
    %v1203 = vunpack.c.h.b16 %v333
    %v1204 = vunpack.c.l.b16 %v334
    %v1205 = vunpack.c.h.b16 %v334
    %v1206 = vunpack.c.l.b16 %v335
    %v1207 = vunpack.c.h.b16 %v335
    %v1208 = vunpack.c.l.b16 %v336
    %v1209 = vunpack.c.h.b16 %v336
    %v1210 = vunpack.c.l.b16 %v337
    %v1211 = vunpack.c.h.b16 %v337
    %v1212 = vunpack.c.l.b16 %v338
    %v1213 = vunpack.c.h.b16 %v338
    %v1214 = vunpack.c.l.b16 %v339
    %v1215 = vunpack.c.h.b16 %v339
    %v1216 = vunpack.c.l.b16 %v340
    %v1217 = vunpack.c.h.b16 %v340
    %v1218 = vunpack.c.l.b16 %v341
    %v1219 = vunpack.c.h.b16 %v341
    %v1220 = vunpack.c.l.b16 %v342
    %v1221 = vunpack.c.h.b16 %v342
    %v1222 = vunpack.c.l.b16 %v343
    %v1223 = vunpack.c.h.b16 %v343
    %v1224 = vunpack.c.l.b16 %v344
    %v1225 = vunpack.c.h.b16 %v344
    %v1226 = vunpack.c.l.b16 %v345
    %v1227 = vunpack.c.h.b16 %v345
    %v1228 = vunpack.c.l.b16 %v346
    %v1229 = vunpack.c.h.b16 %v346
    %v1230 = vunpack.c.l.b16 %v347
    %v1231 = vunpack.c.h.b16 %v347
    %v1232 = vunpack.c.l.b16 %v348
    %v1233 = vunpack.c.h.b16 %v348
    %v1234 = vunpack.c.l.b16 %v349
    %v1235 = vunpack.c.h.b16 %v349
    %v1236 = vunpack.c.l.b16 %v350
    %v1237 = vunpack.c.h.b16 %v350
    %v1238 = vunpack.c.l.b16 %v351
    %v1239 = vunpack.c.h.b16 %v351
    %v1240 = vunpack.c.l.b16 %v352
    %v1241 = vunpack.c.h.b16 %v352
    %v1242 = vunpack.c.l.b16 %v353
    %v1243 = vunpack.c.h.b16 %v353
    %v1244 = vunpack.c.l.b16 %v354
    %v1245 = vunpack.c.h.b16 %v354
    %v1246 = vunpack.c.l.b16 %v355
    %v1247 = vunpack.c.h.b16 %v355
    %v1248 = vunpack.c.l.b16 %v356
    %v1249 = vunpack.c.h.b16 %v356
    %v1250 = vunpack.c.l.b16 %v357
    %v1251 = vunpack.c.h.b16 %v357
    %v1252 = vunpack.c.l.b16 %v358
    %v1253 = vunpack.c.h.b16 %v358
    %v1254 = vunpack.c.l.b16 %v359
    %v1255 = vunpack.c.h.b16 %v359
    %v1256 = vunpack.c.l.b16 %v360
    %v1257 = vunpack.c.h.b16 %v360
    %v1258 = vunpack.c.l.b16 %v361
    %v1259 = vunpack.c.h.b16 %v361
    %v1260 = vunpack.c.l.b16 %v362
    %v1261 = vunpack.c.h.b16 %v362
    %v1262 = vunpack.c.l.b16 %v363
    %v1263 = vunpack.c.h.b16 %v363
    %v1264 = vunpack.c.l.b16 %v364
    %v1265 = vunpack.c.h.b16 %v364
    %v1266 = vunpack.c.l.b16 %v365
    %v1267 = vunpack.c.h.b16 %v365
    %v1268 = vunpack.c.l.b16 %v366
    %v1269 = vunpack.c.h.b16 %v366
    %v1270 = vunpack.c.l.b16 %v367
    %v1271 = vunpack.c.h.b16 %v367
    %v1272 = vunpack.c.l.b16 %v368
    %v1273 = vunpack.c.h.b16 %v368
    %v1274 = vunpack.c.l.b16 %v369
    %v1275 = vunpack.c.h.b16 %v369
    %v1276 = vunpack.c.l.b16 %v370
    %v1277 = vunpack.c.h.b16 %v370
    %v1278 = vunpack.c.l.b16 %v371
    %v1279 = vunpack.c.h.b16 %v371
    %v1280 = vunpack.c.l.b16 %v372
    %v1281 = vunpack.c.h.b16 %v372
    %v1282 = vunpack.c.l.b16 %v373
    %v1283 = vunpack.c.h.b16 %v373
    %v1284 = vunpack.c.l.b16 %v374
    %v1285 = vunpack.c.h.b16 %v374
    %v1286 = vunpack.c.l.b16 %v375
    %v1287 = vunpack.c.h.b16 %v375
    %v1288 = vunpack.c.l.b16 %v376
    %v1289 = vunpack.c.h.b16 %v376
    %v1290 = vunpack.c.l.b16 %v377
    %v1291 = vunpack.c.h.b16 %v377
    %v1292 = vunpack.c.l.b16 %v378
    %v1293 = vunpack.c.h.b16 %v378
    %v1294 = vunpack.c.l.b16 %v379
    %v1295 = vunpack.c.h.b16 %v379
    %v1296 = vunpack.c.l.b16 %v380
    %v1297 = vunpack.c.h.b16 %v380
    %v1298 = vpack.c.b16 %v728, %v722
    %v1299 = vpack.c.b16 %v729, %v723
    %v1300 = vpack.c.b16 %v730, %v724
    %v1301 = vpack.c.b16 %v731, %v725
    %v1302 = vpack.c.b16 %v732, %v726
    %v1303 = vpack.c.b16 %v733, %v727
    %v1304 = vpack.c.b16 %v740, %v734
    %v1305 = vpack.c.b16 %v741, %v735
    %v1306 = vpack.c.b16 %v742, %v736
    %v1307 = vpack.c.b16 %v743, %v737
    %v1308 = vpack.c.b16 %v744, %v738
    %v1309 = vpack.c.b16 %v745, %v739
    %v1310 = vpack.c.b16 %v752, %v746
    %v1311 = vpack.c.b16 %v753, %v747
    %v1312 = vpack.c.b16 %v754, %v748
    %v1313 = vpack.c.b16 %v755, %v749
    %v1314 = vpack.c.b16 %v756, %v750
    %v1315 = vpack.c.b16 %v757, %v751
    %v1316 = vpack.c.b16 %v764, %v758
    %v1317 = vpack.c.b16 %v765, %v759
    %v1318 = vpack.c.b16 %v766, %v760
    %v1319 = vpack.c.b16 %v767, %v761
    %v1320 = vpack.c.b16 %v768, %v762
    %v1321 = vpack.c.b16 %v769, %v763
    %v1322 = vpack.c.b16 %v776, %v770
    %v1323 = vpack.c.b16 %v777, %v771
    %v1324 = vpack.c.b16 %v778, %v772
    %v1325 = vpack.c.b16 %v779, %v773
    %v1326 = vpack.c.b16 %v780, %v774
    %v1327 = vpack.c.b16 %v781, %v775
    %v1328 = vpack.c.b16 %v788, %v782
    %v1329 = vpack.c.b16 %v789, %v783
    %v1330 = vpack.c.b16 %v790, %v784
    %v1331 = vpack.c.b16 %v791, %v785
    %v1332 = vpack.c.b16 %v792, %v786
    %v1333 = vpack.c.b16 %v793, %v787
    %v1334 = vpack.c.b16 %v800, %v794
    %v1335 = vpack.c.b16 %v801, %v795
    %v1336 = vpack.c.b16 %v802, %v796
    %v1337 = vpack.c.b16 %v803, %v797
    %v1338 = vpack.c.b16 %v804, %v798
    %v1339 = vpack.c.b16 %v805, %v799
    %v1340 = vpack.c.b16 %v812, %v806
    %v1341 = vpack.c.b16 %v813, %v807
    %v1342 = vpack.c.b16 %v814, %v808
    %v1343 = vpack.c.b16 %v815, %v809
    %v1344 = vpack.c.b16 %v816, %v810
    %v1345 = vpack.c.b16 %v817, %v811
    %v1346 = vpack.c.b16 %v824, %v818
    %v1347 = vpack.c.b16 %v825, %v819
    %v1348 = vpack.c.b16 %v826, %v820
    %v1349 = vpack.c.b16 %v827, %v821
    %v1350 = vpack.c.b16 %v828, %v822
    %v1351 = vpack.c.b16 %v829, %v823
    %v1352 = vpack.c.b16 %v836, %v830
    %v1353 = vpack.c.b16 %v837, %v831
    %v1354 = vpack.c.b16 %v838, %v832
    %v1355 = vpack.c.b16 %v839, %v833
    %v1356 = vpack.c.b16 %v840, %v834
    %v1357 = vpack.c.b16 %v841, %v835
    %v1358 = vpack.c.b16 %v848, %v842
    %v1359 = vpack.c.b16 %v849, %v843
    %v1360 = vpack.c.b16 %v850, %v844
    %v1361 = vpack.c.b16 %v851, %v845
    %v1362 = vpack.c.b16 %v852, %v846
    %v1363 = vpack.c.b16 %v853, %v847
    %v1364 = vpack.c.b16 %v860, %v854
    %v1365 = vpack.c.b16 %v861, %v855
    %v1366 = vpack.c.b16 %v862, %v856
    %v1367 = vpack.c.b16 %v863, %v857
    %v1368 = vpack.c.b16 %v864, %v858
    %v1369 = vpack.c.b16 %v865, %v859
    %v1370 = vpack.c.b16 %v872, %v866
    %v1371 = vpack.c.b16 %v873, %v867
    %v1372 = vpack.c.b16 %v874, %v868
    %v1373 = vpack.c.b16 %v875, %v869
    %v1374 = vpack.c.b16 %v876, %v870
    %v1375 = vpack.c.b16 %v877, %v871
    %v1376 = vpack.c.b16 %v884, %v878
    %v1377 = vpack.c.b16 %v885, %v879
    %v1378 = vpack.c.b16 %v886, %v880
    %v1379 = vpack.c.b16 %v887, %v881
    %v1380 = vpack.c.b16 %v888, %v882
    %v1381 = vpack.c.b16 %v889, %v883
    %v1382 = vpack.c.b16 %v896, %v890
    %v1383 = vpack.c.b16 %v897, %v891
    %v1384 = vpack.c.b16 %v898, %v892
    %v1385 = vpack.c.b16 %v899, %v893
    %v1386 = vpack.c.b16 %v900, %v894
    %v1387 = vpack.c.b16 %v901, %v895
    %v1388 = vpack.c.b16 %v908, %v902
    %v1389 = vpack.c.b16 %v909, %v903
    %v1390 = vpack.c.b16 %v910, %v904
    %v1391 = vpack.c.b16 %v911, %v905
    %v1392 = vpack.c.b16 %v912, %v906
    %v1393 = vpack.c.b16 %v913, %v907
    %v1394 = vpack.c.b16 %v920, %v914
    %v1395 = vpack.c.b16 %v921, %v915
    %v1396 = vpack.c.b16 %v922, %v916
    %v1397 = vpack.c.b16 %v923, %v917
    %v1398 = vpack.c.b16 %v924, %v918
    %v1399 = vpack.c.b16 %v925, %v919
    %v1400 = vpack.c.b16 %v932, %v926
    %v1401 = vpack.c.b16 %v933, %v927
    %v1402 = vpack.c.b16 %v934, %v928
    %v1403 = vpack.c.b16 %v935, %v929
    %v1404 = vpack.c.b16 %v936, %v930
    %v1405 = vpack.c.b16 %v937, %v931
    %v1406 = vpack.c.b16 %v944, %v938
    %v1407 = vpack.c.b16 %v945, %v939
    %v1408 = vpack.c.b16 %v946, %v940
    %v1409 = vpack.c.b16 %v947, %v941
    %v1410 = vpack.c.b16 %v948, %v942
    %v1411 = vpack.c.b16 %v949, %v943
    %v1412 = vpack.c.b16 %v956, %v950
    %v1413 = vpack.c.b16 %v957, %v951
    %v1414 = vpack.c.b16 %v958, %v952
    %v1415 = vpack.c.b16 %v959, %v953
    %v1416 = vpack.c.b16 %v960, %v954
    %v1417 = vpack.c.b16 %v961, %v955
    %v1418 = vpack.c.b16 %v968, %v962
    %v1419 = vpack.c.b16 %v969, %v963
    %v1420 = vpack.c.b16 %v970, %v964
    %v1421 = vpack.c.b16 %v971, %v965
    %v1422 = vpack.c.b16 %v972, %v966
    %v1423 = vpack.c.b16 %v973, %v967
    %v1424 = vpack.c.b16 %v980, %v974
    %v1425 = vpack.c.b16 %v981, %v975
    %v1426 = vpack.c.b16 %v982, %v976
    %v1427 = vpack.c.b16 %v983, %v977
    %v1428 = vpack.c.b16 %v984, %v978
    %v1429 = vpack.c.b16 %v985, %v979
    %v1430 = vpack.c.b16 %v992, %v986
    %v1431 = vpack.c.b16 %v993, %v987
    %v1432 = vpack.c.b16 %v994, %v988
    %v1433 = vpack.c.b16 %v995, %v989
    %v1434 = vpack.c.b16 %v996, %v990
    %v1435 = vpack.c.b16 %v997, %v991
    %v1436 = vpack.c.b16 %v1004, %v998
    %v1437 = vpack.c.b16 %v1005, %v999
    %v1438 = vpack.c.b16 %v1006, %v1000
    %v1439 = vpack.c.b16 %v1007, %v1001
    %v1440 = vpack.c.b16 %v1008, %v1002
    %v1441 = vpack.c.b16 %v1009, %v1003
    %v1442 = vpack.c.b16 %v1016, %v1010
    %v1443 = vpack.c.b16 %v1017, %v1011
    %v1444 = vpack.c.b16 %v1018, %v1012
    %v1445 = vpack.c.b16 %v1019, %v1013
    %v1446 = vpack.c.b16 %v1020, %v1014
    %v1447 = vpack.c.b16 %v1021, %v1015
    %v1448 = vpack.c.b16 %v1028, %v1022
    %v1449 = vpack.c.b16 %v1029, %v1023
    %v1450 = vpack.c.b16 %v1030, %v1024
    %v1451 = vpack.c.b16 %v1031, %v1025
    %v1452 = vpack.c.b16 %v1032, %v1026
    %v1453 = vpack.c.b16 %v1033, %v1027
    %v1454 = vpack.c.b16 %v1040, %v1034
    %v1455 = vpack.c.b16 %v1041, %v1035
    %v1456 = vpack.c.b16 %v1042, %v1036
    %v1457 = vpack.c.b16 %v1043, %v1037
    %v1458 = vpack.c.b16 %v1044, %v1038
    %v1459 = vpack.c.b16 %v1045, %v1039
    %v1460 = vpack.c.b16 %v1052, %v1046
    %v1461 = vpack.c.b16 %v1053, %v1047
    %v1462 = vpack.c.b16 %v1054, %v1048
    %v1463 = vpack.c.b16 %v1055, %v1049
    %v1464 = vpack.c.b16 %v1056, %v1050
    %v1465 = vpack.c.b16 %v1057, %v1051
    %v1466 = vpack.c.b16 %v1064, %v1058
    %v1467 = vpack.c.b16 %v1065, %v1059
    %v1468 = vpack.c.b16 %v1066, %v1060
    %v1469 = vpack.c.b16 %v1067, %v1061
    %v1470 = vpack.c.b16 %v1068, %v1062
    %v1471 = vpack.c.b16 %v1069, %v1063
    %v1472 = vpack.c.b16 %v1076, %v1070
    %v1473 = vpack.c.b16 %v1077, %v1071
    %v1474 = vpack.c.b16 %v1078, %v1072
    %v1475 = vpack.c.b16 %v1079, %v1073
    %v1476 = vpack.c.b16 %v1080, %v1074
    %v1477 = vpack.c.b16 %v1081, %v1075
    %v1478 = vpack.c.b16 %v1088, %v1082
    %v1479 = vpack.c.b16 %v1089, %v1083
    %v1480 = vpack.c.b16 %v1090, %v1084
    %v1481 = vpack.c.b16 %v1091, %v1085
    %v1482 = vpack.c.b16 %v1092, %v1086
    %v1483 = vpack.c.b16 %v1093, %v1087
    %v1484 = vpack.c.b16 %v1100, %v1094
    %v1485 = vpack.c.b16 %v1101, %v1095
    %v1486 = vpack.c.b16 %v1102, %v1096
    %v1487 = vpack.c.b16 %v1103, %v1097
    %v1488 = vpack.c.b16 %v1104, %v1098
    %v1489 = vpack.c.b16 %v1105, %v1099
    %v1490 = vpack.c.b16 %v1112, %v1106
    %v1491 = vpack.c.b16 %v1113, %v1107
    %v1492 = vpack.c.b16 %v1114, %v1108
    %v1493 = vpack.c.b16 %v1115, %v1109
    %v1494 = vpack.c.b16 %v1116, %v1110
    %v1495 = vpack.c.b16 %v1117, %v1111
    %v1496 = vpack.c.b16 %v1124, %v1118
    %v1497 = vpack.c.b16 %v1125, %v1119
    %v1498 = vpack.c.b16 %v1126, %v1120
    %v1499 = vpack.c.b16 %v1127, %v1121
    %v1500 = vpack.c.b16 %v1128, %v1122
    %v1501 = vpack.c.b16 %v1129, %v1123
    %v1502 = vpack.c.b16 %v1136, %v1130
    %v1503 = vpack.c.b16 %v1137, %v1131
    %v1504 = vpack.c.b16 %v1138, %v1132
    %v1505 = vpack.c.b16 %v1139, %v1133
    %v1506 = vpack.c.b16 %v1140, %v1134
    %v1507 = vpack.c.b16 %v1141, %v1135
    %v1508 = vpack.c.b16 %v1148, %v1142
    %v1509 = vpack.c.b16 %v1149, %v1143
    %v1510 = vpack.c.b16 %v1150, %v1144
    %v1511 = vpack.c.b16 %v1151, %v1145
    %v1512 = vpack.c.b16 %v1152, %v1146
    %v1513 = vpack.c.b16 %v1153, %v1147
    %v1514 = vpack.c.b16 %v1160, %v1154
    %v1515 = vpack.c.b16 %v1161, %v1155
    %v1516 = vpack.c.b16 %v1162, %v1156
    %v1517 = vpack.c.b16 %v1163, %v1157
    %v1518 = vpack.c.b16 %v1164, %v1158
    %v1519 = vpack.c.b16 %v1165, %v1159
    %v1520 = vpack.c.b16 %v1172, %v1166
    %v1521 = vpack.c.b16 %v1173, %v1167
    %v1522 = vpack.c.b16 %v1174, %v1168
    %v1523 = vpack.c.b16 %v1175, %v1169
    %v1524 = vpack.c.b16 %v1176, %v1170
    %v1525 = vpack.c.b16 %v1177, %v1171
    %v1526 = vpack.c.b16 %v1184, %v1178
    %v1527 = vpack.c.b16 %v1185, %v1179
    %v1528 = vpack.c.b16 %v1186, %v1180
    %v1529 = vpack.c.b16 %v1187, %v1181
    %v1530 = vpack.c.b16 %v1188, %v1182
    %v1531 = vpack.c.b16 %v1189, %v1183
    %v1532 = vpack.c.b16 %v1196, %v1190
    %v1533 = vpack.c.b16 %v1197, %v1191
    %v1534 = vpack.c.b16 %v1198, %v1192
    %v1535 = vpack.c.b16 %v1199, %v1193
    %v1536 = vpack.c.b16 %v1200, %v1194
    %v1537 = vpack.c.b16 %v1201, %v1195
    %v1538 = vpack.c.b16 %v1208, %v1202
    %v1539 = vpack.c.b16 %v1209, %v1203
    %v1540 = vpack.c.b16 %v1210, %v1204
    %v1541 = vpack.c.b16 %v1211, %v1205
    %v1542 = vpack.c.b16 %v1212, %v1206
    %v1543 = vpack.c.b16 %v1213, %v1207
    %v1544 = vpack.c.b16 %v1220, %v1214
    %v1545 = vpack.c.b16 %v1221, %v1215
    %v1546 = vpack.c.b16 %v1222, %v1216
    %v1547 = vpack.c.b16 %v1223, %v1217
    %v1548 = vpack.c.b16 %v1224, %v1218
    %v1549 = vpack.c.b16 %v1225, %v1219
    %v1550 = vpack.c.b16 %v1232, %v1226
    %v1551 = vpack.c.b16 %v1233, %v1227
    %v1552 = vpack.c.b16 %v1234, %v1228
    %v1553 = vpack.c.b16 %v1235, %v1229
    %v1554 = vpack.c.b16 %v1236, %v1230
    %v1555 = vpack.c.b16 %v1237, %v1231
    %v1556 = vpack.c.b16 %v1244, %v1238
    %v1557 = vpack.c.b16 %v1245, %v1239
    %v1558 = vpack.c.b16 %v1246, %v1240
    %v1559 = vpack.c.b16 %v1247, %v1241
    %v1560 = vpack.c.b16 %v1248, %v1242
    %v1561 = vpack.c.b16 %v1249, %v1243
    %v1562 = vpack.c.b16 %v1256, %v1250
    %v1563 = vpack.c.b16 %v1257, %v1251
    %v1564 = vpack.c.b16 %v1258, %v1252
    %v1565 = vpack.c.b16 %v1259, %v1253
    %v1566 = vpack.c.b16 %v1260, %v1254
    %v1567 = vpack.c.b16 %v1261, %v1255
    %v1568 = vpack.c.b16 %v1268, %v1262
    %v1569 = vpack.c.b16 %v1269, %v1263
    %v1570 = vpack.c.b16 %v1270, %v1264
    %v1571 = vpack.c.b16 %v1271, %v1265
    %v1572 = vpack.c.b16 %v1272, %v1266
    %v1573 = vpack.c.b16 %v1273, %v1267
    %v1574 = vpack.c.b16 %v1280, %v1274
    %v1575 = vpack.c.b16 %v1281, %v1275
    %v1576 = vpack.c.b16 %v1282, %v1276
    %v1577 = vpack.c.b16 %v1283, %v1277
    %v1578 = vpack.c.b16 %v1284, %v1278
    %v1579 = vpack.c.b16 %v1285, %v1279
    %v1580 = vpack.c.b16 %v1292, %v1286
    %v1581 = vpack.c.b16 %v1293, %v1287
    %v1582 = vpack.c.b16 %v1294, %v1288
    %v1583 = vpack.c.b16 %v1295, %v1289
    %v1584 = vpack.c.b16 %v1296, %v1290
    %v1585 = vpack.c.b16 %v1297, %v1291
    %1874 = vmatprep.subr.bf16.mxu0 %v1299
    %1875 = vmatpush1.bf16.msra.mxu0 %v1298
    %1876 = vmatprep.subr.bf16.mxu0 %v1305
    %1877 = vmatpush1.bf16.msra.mxu0 %v1304
    %1878 = vmatprep.subr.bf16.mxu0 %v1311
    %1879 = vmatpush1.bf16.msra.mxu0 %v1310
    %1880 = vmatprep.subr.bf16.mxu0 %v1317
    %1881 = vmatpush1.bf16.msra.mxu0 %v1316
    %1882 = vmatprep.subr.bf16.mxu0 %v1323
    %1883 = vmatpush1.bf16.msra.mxu0 %v1322
    %1884 = vmatprep.subr.bf16.mxu0 %v1329
    %1885 = vmatpush1.bf16.msra.mxu0 %v1328
    %1886 = vmatprep.subr.bf16.mxu0 %v1335
    %1887 = vmatpush1.bf16.msra.mxu0 %v1334
    %1888 = vmatprep.subr.bf16.mxu0 %v1341
    %1889 = vmatpush1.bf16.msra.mxu0 %v1340
    %1890 = vmatprep.subr.bf16.mxu0 %v1347
    %1891 = vmatpush1.bf16.msra.mxu0 %v1346
    %1892 = vmatprep.subr.bf16.mxu0 %v1353
    %1893 = vmatpush1.bf16.msra.mxu0 %v1352
    %1894 = vmatprep.subr.bf16.mxu0 %v1359
    %1895 = vmatpush1.bf16.msra.mxu0 %v1358
    %1896 = vmatprep.subr.bf16.mxu0 %v1365
    %1897 = vmatpush1.bf16.msra.mxu0 %v1364
    %1898 = vmatprep.subr.bf16.mxu0 %v1371
    %1899 = vmatpush1.bf16.msra.mxu0 %v1370
    %1900 = vmatprep.subr.bf16.mxu0 %v1377
    %1901 = vmatpush1.bf16.msra.mxu0 %v1376
    %1902 = vmatprep.subr.bf16.mxu0 %v1383
    %1903 = vmatpush1.bf16.msra.mxu0 %v1382
    %1904 = vmatprep.subr.bf16.mxu0 %v1389
    %1905 = vmatpush1.bf16.msra.mxu0 %v1388
    %1906 = vmatprep.mubr.bf16.mxu0 %v423
    %1907 = vmatmul.mubr.bf16.gmra.mrb[0].mxu0 %v422
    %v1908 = vpop.f32.mrb[0].mxu0
    %v1909 = vadd.f32 %v386, %v1908
    %v1910 = vpop.f32.mrb[0].mxu0
    %v1911 = vadd.f32 %v390, %v1910
    %v1912 = vpop.f32.mrb[0].mxu0
    %v1913 = vpop.f32.mrb[0].mxu0
    %1914 = vdwg.mxu0
    %1915 = vmatprep.subr.bf16.mxu0 %v1395
    %1916 = vmatpush1.bf16.msra.mxu0 %v1394
    %1917 = vmatprep.subr.bf16.mxu0 %v1401
    %1918 = vmatpush1.bf16.msra.mxu0 %v1400
    %1919 = vmatprep.subr.bf16.mxu0 %v1407
    %1920 = vmatpush1.bf16.msra.mxu0 %v1406
    %1921 = vmatprep.subr.bf16.mxu0 %v1413
    %1922 = vmatpush1.bf16.msra.mxu0 %v1412
    %1923 = vmatprep.subr.bf16.mxu0 %v1419
    %1924 = vmatpush1.bf16.msra.mxu0 %v1418
    %1925 = vmatprep.subr.bf16.mxu0 %v1425
    %1926 = vmatpush1.bf16.msra.mxu0 %v1424
    %1927 = vmatprep.subr.bf16.mxu0 %v1431
    %1928 = vmatpush1.bf16.msra.mxu0 %v1430
    %1929 = vmatprep.subr.bf16.mxu0 %v1437
    %1930 = vmatpush1.bf16.msra.mxu0 %v1436
    %1931 = vmatprep.subr.bf16.mxu0 %v1443
    %1932 = vmatpush1.bf16.msra.mxu0 %v1442
    %1933 = vmatprep.subr.bf16.mxu0 %v1449
    %1934 = vmatpush1.bf16.msra.mxu0 %v1448
    %1935 = vmatprep.subr.bf16.mxu0 %v1455
    %1936 = vmatpush1.bf16.msra.mxu0 %v1454
    %1937 = vmatprep.subr.bf16.mxu0 %v1461
    %1938 = vmatpush1.bf16.msra.mxu0 %v1460
    %1939 = vmatprep.subr.bf16.mxu0 %v1467
    %1940 = vmatpush1.bf16.msra.mxu0 %v1466
    %1941 = vmatprep.subr.bf16.mxu0 %v1473
    %1942 = vmatpush1.bf16.msra.mxu0 %v1472
    %1943 = vmatprep.subr.bf16.mxu0 %v1479
    %1944 = vmatpush1.bf16.msra.mxu0 %v1478
    %1945 = vmatprep.subr.bf16.mxu0 %v1485
    %1946 = vmatpush1.bf16.msra.mxu0 %v1484
    %1947 = vmatprep.mubr.bf16.mxu0 %v425
    %1948 = vmatmul.mubr.bf16.gmra.mrb[0].mxu0 %v424
    %v1949 = vpop.f32.mrb[0].mxu0
    %v1950 = vadd.f32 %v1909, %v1949
    %v1951 = vpop.f32.mrb[0].mxu0
    %v1952 = vadd.f32 %v1911, %v1951
    %v1953 = vpop.f32.mrb[0].mxu0
    %v1954 = vpop.f32.mrb[0].mxu0
    %1955 = vdwg.mxu0
    %1956 = vmatprep.subr.bf16.mxu0 %v1491
    %1957 = vmatpush1.bf16.msra.mxu0 %v1490
    %1958 = vmatprep.subr.bf16.mxu0 %v1497
    %1959 = vmatpush1.bf16.msra.mxu0 %v1496
    %1960 = vmatprep.subr.bf16.mxu0 %v1503
    %1961 = vmatpush1.bf16.msra.mxu0 %v1502
    %1962 = vmatprep.subr.bf16.mxu0 %v1509
    %1963 = vmatpush1.bf16.msra.mxu0 %v1508
    %1964 = vmatprep.subr.bf16.mxu0 %v1515
    %1965 = vmatpush1.bf16.msra.mxu0 %v1514
    %1966 = vmatprep.subr.bf16.mxu0 %v1521
    %1967 = vmatpush1.bf16.msra.mxu0 %v1520
    %1968 = vmatprep.subr.bf16.mxu0 %v1527
    %1969 = vmatpush1.bf16.msra.mxu0 %v1526
    %1970 = vmatprep.subr.bf16.mxu0 %v1533
    %1971 = vmatpush1.bf16.msra.mxu0 %v1532
    %1972 = vmatprep.subr.bf16.mxu0 %v1539
    %1973 = vmatpush1.bf16.msra.mxu0 %v1538
    %1974 = vmatprep.subr.bf16.mxu0 %v1545
    %1975 = vmatpush1.bf16.msra.mxu0 %v1544
    %1976 = vmatprep.subr.bf16.mxu0 %v1551
    %1977 = vmatpush1.bf16.msra.mxu0 %v1550
    %1978 = vmatprep.subr.bf16.mxu0 %v1557
    %1979 = vmatpush1.bf16.msra.mxu0 %v1556
    %1980 = vmatprep.subr.bf16.mxu0 %v1563
    %1981 = vmatpush1.bf16.msra.mxu0 %v1562
    %1982 = vmatprep.subr.bf16.mxu0 %v1569
    %1983 = vmatpush1.bf16.msra.mxu0 %v1568
    %1984 = vmatprep.subr.bf16.mxu0 %v1575
    %1985 = vmatpush1.bf16.msra.mxu0 %v1574
    %1986 = vmatprep.subr.bf16.mxu0 %v1581
    %1987 = vmatpush1.bf16.msra.mxu0 %v1580
    %1988 = vmatprep.mubr.bf16.mxu0 %v427
    %1989 = vmatmul.mubr.bf16.gmra.mrb[0].mxu0 %v426
    %v1990 = vpop.f32.mrb[0].mxu0
    %v1991 = vadd.f32 %v1950, %v1990
    %v1992 = vpop.f32.mrb[0].mxu0
    %v1993 = vadd.f32 %v1952, %v1992
    %v1994 = vpop.f32.mrb[0].mxu0
    %v1995 = vpop.f32.mrb[0].mxu0
    %1996 = vdwg.mxu0
    %1997 = vmatprep.subr.bf16.mxu0 %v1301
    %1998 = vmatpush1.bf16.msra.mxu0 %v1300
    %1999 = vmatprep.subr.bf16.mxu0 %v1307
    %2000 = vmatpush1.bf16.msra.mxu0 %v1306
    %2001 = vmatprep.subr.bf16.mxu0 %v1313
    %2002 = vmatpush1.bf16.msra.mxu0 %v1312
    %2003 = vmatprep.subr.bf16.mxu0 %v1319
    %2004 = vmatpush1.bf16.msra.mxu0 %v1318
    %2005 = vmatprep.subr.bf16.mxu0 %v1325
    %2006 = vmatpush1.bf16.msra.mxu0 %v1324
    %2007 = vmatprep.subr.bf16.mxu0 %v1331
    %2008 = vmatpush1.bf16.msra.mxu0 %v1330
    %2009 = vmatprep.subr.bf16.mxu0 %v1337
    %2010 = vmatpush1.bf16.msra.mxu0 %v1336
    %2011 = vmatprep.subr.bf16.mxu0 %v1343
    %2012 = vmatpush1.bf16.msra.mxu0 %v1342
    %2013 = vmatprep.subr.bf16.mxu0 %v1349
    %2014 = vmatpush1.bf16.msra.mxu0 %v1348
    %2015 = vmatprep.subr.bf16.mxu0 %v1355
    %2016 = vmatpush1.bf16.msra.mxu0 %v1354
    %2017 = vmatprep.subr.bf16.mxu0 %v1361
    %2018 = vmatpush1.bf16.msra.mxu0 %v1360
    %2019 = vmatprep.subr.bf16.mxu0 %v1367
    %2020 = vmatpush1.bf16.msra.mxu0 %v1366
    %2021 = vmatprep.subr.bf16.mxu0 %v1373
    %2022 = vmatpush1.bf16.msra.mxu0 %v1372
    %2023 = vmatprep.subr.bf16.mxu0 %v1379
    %2024 = vmatpush1.bf16.msra.mxu0 %v1378
    %2025 = vmatprep.subr.bf16.mxu0 %v1385
    %2026 = vmatpush1.bf16.msra.mxu0 %v1384
    %2027 = vmatprep.subr.bf16.mxu0 %v1391
    %2028 = vmatpush1.bf16.msra.mxu0 %v1390
    %2029 = vmatprep.mubr.bf16.mxu0 %v423
    %2030 = vmatmul.mubr.bf16.gmra.mrb[0].mxu0 %v422
    %v2031 = vpop.f32.mrb[0].mxu0
    %v2032 = vadd.f32 %v394, %v2031
    %v2033 = vpop.f32.mrb[0].mxu0
    %v2034 = vadd.f32 %v398, %v2033
    %v2035 = vpop.f32.mrb[0].mxu0
    %v2036 = vpop.f32.mrb[0].mxu0
    %2037 = vdwg.mxu0
    %2038 = vmatprep.subr.bf16.mxu0 %v1397
    %2039 = vmatpush1.bf16.msra.mxu0 %v1396
    %2040 = vmatprep.subr.bf16.mxu0 %v1403
    %2041 = vmatpush1.bf16.msra.mxu0 %v1402
    %2042 = vmatprep.subr.bf16.mxu0 %v1409
    %2043 = vmatpush1.bf16.msra.mxu0 %v1408
    %2044 = vmatprep.subr.bf16.mxu0 %v1415
    %2045 = vmatpush1.bf16.msra.mxu0 %v1414
    %2046 = vmatprep.subr.bf16.mxu0 %v1421
    %2047 = vmatpush1.bf16.msra.mxu0 %v1420
    %2048 = vmatprep.subr.bf16.mxu0 %v1427
    %2049 = vmatpush1.bf16.msra.mxu0 %v1426
    %2050 = vmatprep.subr.bf16.mxu0 %v1433
    %2051 = vmatpush1.bf16.msra.mxu0 %v1432
    %2052 = vmatprep.subr.bf16.mxu0 %v1439
    %2053 = vmatpush1.bf16.msra.mxu0 %v1438
    %2054 = vmatprep.subr.bf16.mxu0 %v1445
    %2055 = vmatpush1.bf16.msra.mxu0 %v1444
    %2056 = vmatprep.subr.bf16.mxu0 %v1451
    %2057 = vmatpush1.bf16.msra.mxu0 %v1450
    %2058 = vmatprep.subr.bf16.mxu0 %v1457
    %2059 = vmatpush1.bf16.msra.mxu0 %v1456
    %2060 = vmatprep.subr.bf16.mxu0 %v1463
    %2061 = vmatpush1.bf16.msra.mxu0 %v1462
    %2062 = vmatprep.subr.bf16.mxu0 %v1469
    %2063 = vmatpush1.bf16.msra.mxu0 %v1468
    %2064 = vmatprep.subr.bf16.mxu0 %v1475
    %2065 = vmatpush1.bf16.msra.mxu0 %v1474
    %2066 = vmatprep.subr.bf16.mxu0 %v1481
    %2067 = vmatpush1.bf16.msra.mxu0 %v1480
    %2068 = vmatprep.subr.bf16.mxu0 %v1487
    %2069 = vmatpush1.bf16.msra.mxu0 %v1486
    %2070 = vmatprep.mubr.bf16.mxu0 %v425
    %2071 = vmatmul.mubr.bf16.gmra.mrb[0].mxu0 %v424
    %v2072 = vpop.f32.mrb[0].mxu0
    %v2073 = vadd.f32 %v2032, %v2072
    %v2074 = vpop.f32.mrb[0].mxu0
    %v2075 = vadd.f32 %v2034, %v2074
    %v2076 = vpop.f32.mrb[0].mxu0
    %v2077 = vpop.f32.mrb[0].mxu0
    %2078 = vdwg.mxu0
    %2079 = vmatprep.subr.bf16.mxu0 %v1493
    %2080 = vmatpush1.bf16.msra.mxu0 %v1492
    %2081 = vmatprep.subr.bf16.mxu0 %v1499
    %2082 = vmatpush1.bf16.msra.mxu0 %v1498
    %2083 = vmatprep.subr.bf16.mxu0 %v1505
    %2084 = vmatpush1.bf16.msra.mxu0 %v1504
    %2085 = vmatprep.subr.bf16.mxu0 %v1511
    %2086 = vmatpush1.bf16.msra.mxu0 %v1510
    %2087 = vmatprep.subr.bf16.mxu0 %v1517
    %2088 = vmatpush1.bf16.msra.mxu0 %v1516
    %2089 = vmatprep.subr.bf16.mxu0 %v1523
    %2090 = vmatpush1.bf16.msra.mxu0 %v1522
    %2091 = vmatprep.subr.bf16.mxu0 %v1529
    %2092 = vmatpush1.bf16.msra.mxu0 %v1528
    %2093 = vmatprep.subr.bf16.mxu0 %v1535
    %2094 = vmatpush1.bf16.msra.mxu0 %v1534
    %2095 = vmatprep.subr.bf16.mxu0 %v1541
    %2096 = vmatpush1.bf16.msra.mxu0 %v1540
    %2097 = vmatprep.subr.bf16.mxu0 %v1547
    %2098 = vmatpush1.bf16.msra.mxu0 %v1546
    %2099 = vmatprep.subr.bf16.mxu0 %v1553
    %2100 = vmatpush1.bf16.msra.mxu0 %v1552
    %2101 = vmatprep.subr.bf16.mxu0 %v1559
    %2102 = vmatpush1.bf16.msra.mxu0 %v1558
    %2103 = vmatprep.subr.bf16.mxu0 %v1565
    %2104 = vmatpush1.bf16.msra.mxu0 %v1564
    %2105 = vmatprep.subr.bf16.mxu0 %v1571
    %2106 = vmatpush1.bf16.msra.mxu0 %v1570
    %2107 = vmatprep.subr.bf16.mxu0 %v1577
    %2108 = vmatpush1.bf16.msra.mxu0 %v1576
    %2109 = vmatprep.subr.bf16.mxu0 %v1583
    %2110 = vmatpush1.bf16.msra.mxu0 %v1582
    %2111 = vmatprep.mubr.bf16.mxu0 %v427
    %2112 = vmatmul.mubr.bf16.gmra.mrb[0].mxu0 %v426
    %v2113 = vpop.f32.mrb[0].mxu0
    %v2114 = vadd.f32 %v2073, %v2113
    %v2115 = vpop.f32.mrb[0].mxu0
    %v2116 = vadd.f32 %v2075, %v2115
    %v2117 = vpop.f32.mrb[0].mxu0
    %v2118 = vpop.f32.mrb[0].mxu0
    %2119 = vdwg.mxu0
    %2120 = vmatprep.subr.bf16.mxu0 %v1303
    %2121 = vmatpush1.bf16.msra.mxu0 %v1302
    %2122 = vmatprep.subr.bf16.mxu0 %v1309
    %2123 = vmatpush1.bf16.msra.mxu0 %v1308
    %2124 = vmatprep.subr.bf16.mxu0 %v1315
    %2125 = vmatpush1.bf16.msra.mxu0 %v1314
    %2126 = vmatprep.subr.bf16.mxu0 %v1321
    %2127 = vmatpush1.bf16.msra.mxu0 %v1320
    %2128 = vmatprep.subr.bf16.mxu0 %v1327
    %2129 = vmatpush1.bf16.msra.mxu0 %v1326
    %2130 = vmatprep.subr.bf16.mxu0 %v1333
    %2131 = vmatpush1.bf16.msra.mxu0 %v1332
    %2132 = vmatprep.subr.bf16.mxu0 %v1339
    %2133 = vmatpush1.bf16.msra.mxu0 %v1338
    %2134 = vmatprep.subr.bf16.mxu0 %v1345
    %2135 = vmatpush1.bf16.msra.mxu0 %v1344
    %2136 = vmatprep.subr.bf16.mxu0 %v1351
    %2137 = vmatpush1.bf16.msra.mxu0 %v1350
    %2138 = vmatprep.subr.bf16.mxu0 %v1357
    %2139 = vmatpush1.bf16.msra.mxu0 %v1356
    %2140 = vmatprep.subr.bf16.mxu0 %v1363
    %2141 = vmatpush1.bf16.msra.mxu0 %v1362
    %2142 = vmatprep.subr.bf16.mxu0 %v1369
    %2143 = vmatpush1.bf16.msra.mxu0 %v1368
    %2144 = vmatprep.subr.bf16.mxu0 %v1375
    %2145 = vmatpush1.bf16.msra.mxu0 %v1374
    %2146 = vmatprep.subr.bf16.mxu0 %v1381
    %2147 = vmatpush1.bf16.msra.mxu0 %v1380
    %2148 = vmatprep.subr.bf16.mxu0 %v1387
    %2149 = vmatpush1.bf16.msra.mxu0 %v1386
    %2150 = vmatprep.subr.bf16.mxu0 %v1393
    %2151 = vmatpush1.bf16.msra.mxu0 %v1392
    %2152 = vmatprep.mubr.bf16.mxu0 %v423
    %2153 = vmatmul.mubr.bf16.gmra.mrb[0].mxu0 %v422
    %v2154 = vpop.f32.mrb[0].mxu0
    %v2155 = vadd.f32 %v402, %v2154
    %v2156 = vpop.f32.mrb[0].mxu0
    %v2157 = vadd.f32 %v406, %v2156
    %v2158 = vpop.f32.mrb[0].mxu0
    %v2159 = vpop.f32.mrb[0].mxu0
    %2160 = vdwg.mxu0
    %2161 = vmatprep.subr.bf16.mxu0 %v1399
    %2162 = vmatpush1.bf16.msra.mxu0 %v1398
    %2163 = vmatprep.subr.bf16.mxu0 %v1405
    %2164 = vmatpush1.bf16.msra.mxu0 %v1404
    %2165 = vmatprep.subr.bf16.mxu0 %v1411
    %2166 = vmatpush1.bf16.msra.mxu0 %v1410
    %2167 = vmatprep.subr.bf16.mxu0 %v1417
    %2168 = vmatpush1.bf16.msra.mxu0 %v1416
    %2169 = vmatprep.subr.bf16.mxu0 %v1423
    %2170 = vmatpush1.bf16.msra.mxu0 %v1422
    %2171 = vmatprep.subr.bf16.mxu0 %v1429
    %2172 = vmatpush1.bf16.msra.mxu0 %v1428
    %2173 = vmatprep.subr.bf16.mxu0 %v1435
    %2174 = vmatpush1.bf16.msra.mxu0 %v1434
    %2175 = vmatprep.subr.bf16.mxu0 %v1441
    %2176 = vmatpush1.bf16.msra.mxu0 %v1440
    %2177 = vmatprep.subr.bf16.mxu0 %v1447
    %2178 = vmatpush1.bf16.msra.mxu0 %v1446
    %2179 = vmatprep.subr.bf16.mxu0 %v1453
    %2180 = vmatpush1.bf16.msra.mxu0 %v1452
    %2181 = vmatprep.subr.bf16.mxu0 %v1459
    %2182 = vmatpush1.bf16.msra.mxu0 %v1458
    %2183 = vmatprep.subr.bf16.mxu0 %v1465
    %2184 = vmatpush1.bf16.msra.mxu0 %v1464
    %2185 = vmatprep.subr.bf16.mxu0 %v1471
    %2186 = vmatpush1.bf16.msra.mxu0 %v1470
    %2187 = vmatprep.subr.bf16.mxu0 %v1477
    %2188 = vmatpush1.bf16.msra.mxu0 %v1476
    %2189 = vmatprep.subr.bf16.mxu0 %v1483
    %2190 = vmatpush1.bf16.msra.mxu0 %v1482
    %2191 = vmatprep.subr.bf16.mxu0 %v1489
    %2192 = vmatpush1.bf16.msra.mxu0 %v1488
    %2193 = vmatprep.mubr.bf16.mxu0 %v425
    %2194 = vmatmul.mubr.bf16.gmra.mrb[0].mxu0 %v424
    %v2195 = vpop.f32.mrb[0].mxu0
    %v2196 = vadd.f32 %v2155, %v2195
    %v2197 = vpop.f32.mrb[0].mxu0
    %v2198 = vadd.f32 %v2157, %v2197
    %v2199 = vpop.f32.mrb[0].mxu0
    %v2200 = vpop.f32.mrb[0].mxu0
    %2201 = vdwg.mxu0
    %2202 = vmatprep.subr.bf16.mxu0 %v1495
    %2203 = vmatpush1.bf16.msra.mxu0 %v1494
    %2204 = vmatprep.subr.bf16.mxu0 %v1501
    %2205 = vmatpush1.bf16.msra.mxu0 %v1500
    %2206 = vmatprep.subr.bf16.mxu0 %v1507
    %2207 = vmatpush1.bf16.msra.mxu0 %v1506
    %2208 = vmatprep.subr.bf16.mxu0 %v1513
    %2209 = vmatpush1.bf16.msra.mxu0 %v1512
    %2210 = vmatprep.subr.bf16.mxu0 %v1519
    %2211 = vmatpush1.bf16.msra.mxu0 %v1518
    %2212 = vmatprep.subr.bf16.mxu0 %v1525
    %2213 = vmatpush1.bf16.msra.mxu0 %v1524
    %2214 = vmatprep.subr.bf16.mxu0 %v1531
    %2215 = vmatpush1.bf16.msra.mxu0 %v1530
    %2216 = vmatprep.subr.bf16.mxu0 %v1537
    %2217 = vmatpush1.bf16.msra.mxu0 %v1536
    %2218 = vmatprep.subr.bf16.mxu0 %v1543
    %2219 = vmatpush1.bf16.msra.mxu0 %v1542
    %2220 = vmatprep.subr.bf16.mxu0 %v1549
    %2221 = vmatpush1.bf16.msra.mxu0 %v1548
    %2222 = vmatprep.subr.bf16.mxu0 %v1555
    %2223 = vmatpush1.bf16.msra.mxu0 %v1554
    %2224 = vmatprep.subr.bf16.mxu0 %v1561
    %2225 = vmatpush1.bf16.msra.mxu0 %v1560
    %2226 = vmatprep.subr.bf16.mxu0 %v1567
    %2227 = vmatpush1.bf16.msra.mxu0 %v1566
    %2228 = vmatprep.subr.bf16.mxu0 %v1573
    %2229 = vmatpush1.bf16.msra.mxu0 %v1572
    %2230 = vmatprep.subr.bf16.mxu0 %v1579
    %2231 = vmatpush1.bf16.msra.mxu0 %v1578
    %2232 = vmatprep.subr.bf16.mxu0 %v1585
    %2233 = vmatpush1.bf16.msra.mxu0 %v1584
    %2234 = vmatprep.mubr.bf16.mxu0 %v427
    %2235 = vmatmul.mubr.bf16.gmra.mrb[0].mxu0 %v426
    %v2236 = vpop.f32.mrb[0].mxu0
    %v2237 = vadd.f32 %v2196, %v2236
    %v2238 = vpop.f32.mrb[0].mxu0
    %v2239 = vadd.f32 %v2198, %v2238
    %v2240 = vpop.f32.mrb[0].mxu0
    %v2241 = vpop.f32.mrb[0].mxu0
    %2242 = vdwg.mxu0
    %v2243 = vtanh.pop %v1991
    %v2244 = vtanh.pop %v1993
    %v2245 = vtanh.pop %v2114
    %v2246 = vtanh.pop %v2116
    %v2247 = vtanh.pop %v2237
    %v2248 = vtanh.pop %v2239
    %v2249 = vpack.c.bf16 %v2243, %v2243
    %v2250 = vpack.c.bf16 %v2244, %v2244
    %v2251 = vpack.c.bf16 %v2245, %v2245
    %v2252 = vpack.c.bf16 %v2246, %v2246
    %v2253 = vpack.c.bf16 %v2247, %v2247
    %v2254 = vpack.c.bf16 %v2248, %v2248
    %v2255 = vld [vmem:[#allocation7] sm:$0xf]
    %v2256 = vld [vmem:[#allocation7 + $0x4] sm:$0xf]
    %v2257 = vld [vmem:[#allocation7 + $0x8] sm:$0xf]
    %v2258 = vld [vmem:[#allocation7 + $0xc] sm:$0xf]
    %v2259 = vld [vmem:[#allocation7 + $0x10] sm:$0xf]
    %v2260 = vld [vmem:[#allocation7 + $0x14] sm:$0xf]
    %v2261 = vld [vmem:[#allocation7 + $0x18] sm:$0xf]
    %v2262 = vld [vmem:[#allocation7 + $0x1c] sm:$0xf]
    %v2263 = vld [vmem:[#allocation7 + $0x20] sm:$0xf]
    %v2264 = vld [vmem:[#allocation7 + $0x24] sm:$0xf]
    %v2265 = vld [vmem:[#allocation7 + $0x28] sm:$0xf]
    %v2266 = vld [vmem:[#allocation7 + $0x2c] sm:$0xf]
    %v2267 = vld [vmem:[#allocation7 + $0x30] sm:$0xf]
    %v2268 = vld [vmem:[#allocation7 + $0x34] sm:$0xf]
    %v2269 = vld [vmem:[#allocation7 + $0x38] sm:$0xf]
    %v2270 = vld [vmem:[#allocation7 + $0x3c] sm:$0xf]
    %v2271 = vld [vmem:[#allocation7 + $0x40] sm:$0xf]
    %v2272 = vld [vmem:[#allocation7 + $0x44] sm:$0xf]
    %v2273 = vld [vmem:[#allocation7 + $0x48] sm:$0xf]
    %v2274 = vld [vmem:[#allocation7 + $0x4c] sm:$0xf]
    %v2275 = vld [vmem:[#allocation7 + $0x50] sm:$0xf]
    %v2276 = vld [vmem:[#allocation7 + $0x54] sm:$0xf]
    %v2277 = vld [vmem:[#allocation7 + $0x58] sm:$0xf]
    %v2278 = vld [vmem:[#allocation7 + $0x5c] sm:$0xf]
    %v2279 = vld [vmem:[#allocation7 + $0x60] sm:$0xf]
    %v2280 = vld [vmem:[#allocation7 + $0x64] sm:$0xf]
    %v2281 = vld [vmem:[#allocation7 + $0x68] sm:$0xf]
    %v2282 = vld [vmem:[#allocation7 + $0x6c] sm:$0xf]
    %v2283 = vld [vmem:[#allocation7 + $0x70] sm:$0xf]
    %v2284 = vld [vmem:[#allocation7 + $0x74] sm:$0xf]
    %v2285 = vld [vmem:[#allocation7 + $0x78] sm:$0xf]
    %v2286 = vld [vmem:[#allocation7 + $0x7c] sm:$0xf]
    %v2287 = vld [vmem:[#allocation7 + $0x80] sm:$0xf]
    %v2288 = vld [vmem:[#allocation7 + $0x84] sm:$0xf]
    %v2289 = vld [vmem:[#allocation7 + $0x88] sm:$0xf]
    %v2290 = vld [vmem:[#allocation7 + $0x8c] sm:$0xf]
    %v2291 = vld [vmem:[#allocation7 + $0x90] sm:$0xf]
    %v2292 = vld [vmem:[#allocation7 + $0x94] sm:$0xf]
    %v2293 = vld [vmem:[#allocation7 + $0x98] sm:$0xf]
    %v2294 = vld [vmem:[#allocation7 + $0x9c] sm:$0xf]
    %v2295 = vld [vmem:[#allocation7 + $0xa0] sm:$0xf]
    %v2296 = vld [vmem:[#allocation7 + $0xa4] sm:$0xf]
    %v2297 = vld [vmem:[#allocation7 + $0xa8] sm:$0xf]
    %v2298 = vld [vmem:[#allocation7 + $0xac] sm:$0xf]
    %v2299 = vld [vmem:[#allocation7 + $0xb0] sm:$0xf]
    %v2300 = vld [vmem:[#allocation7 + $0xb4] sm:$0xf]
    %v2301 = vld [vmem:[#allocation7 + $0xb8] sm:$0xf]
    %v2302 = vld [vmem:[#allocation7 + $0xbc] sm:$0xf]
    %v2303 = vld [vmem:[#allocation7 + $0xc0] sm:$0xf]
    %v2304 = vld [vmem:[#allocation7 + $0xc4] sm:$0xf]
    %v2305 = vld [vmem:[#allocation7 + $0xc8] sm:$0xf]
    %v2306 = vld [vmem:[#allocation7 + $0xcc] sm:$0xf]
    %v2307 = vld [vmem:[#allocation7 + $0xd0] sm:$0xf]
    %v2308 = vld [vmem:[#allocation7 + $0xd4] sm:$0xf]
    %v2309 = vld [vmem:[#allocation7 + $0xd8] sm:$0xf]
    %v2310 = vld [vmem:[#allocation7 + $0xdc] sm:$0xf]
    %v2311 = vld [vmem:[#allocation7 + $0xe0] sm:$0xf]
    %v2312 = vld [vmem:[#allocation7 + $0xe4] sm:$0xf]
    %v2313 = vld [vmem:[#allocation7 + $0xe8] sm:$0xf]
    %v2314 = vld [vmem:[#allocation7 + $0xec] sm:$0xf]
    %v2315 = vld [vmem:[#allocation7 + $0xf0] sm:$0xf]
    %v2316 = vld [vmem:[#allocation7 + $0xf4] sm:$0xf]
    %v2317 = vld [vmem:[#allocation7 + $0xf8] sm:$0xf]
    %v2318 = vld [vmem:[#allocation7 + $0xfc] sm:$0xf]
    %v2319 = vld [vmem:[#allocation7 + $0x100] sm:$0xf]
    %v2320 = vld [vmem:[#allocation7 + $0x104] sm:$0xf]
    %v2321 = vld [vmem:[#allocation7 + $0x108] sm:$0xf]
    %v2322 = vld [vmem:[#allocation7 + $0x10c] sm:$0xf]
    %v2323 = vld [vmem:[#allocation7 + $0x110] sm:$0xf]
    %v2324 = vld [vmem:[#allocation7 + $0x114] sm:$0xf]
    %v2325 = vld [vmem:[#allocation7 + $0x118] sm:$0xf]
    %v2326 = vld [vmem:[#allocation7 + $0x11c] sm:$0xf]
    %v2327 = vld [vmem:[#allocation7 + $0x120] sm:$0xf]
    %v2328 = vld [vmem:[#allocation7 + $0x124] sm:$0xf]
    %v2329 = vld [vmem:[#allocation7 + $0x128] sm:$0xf]
    %v2330 = vld [vmem:[#allocation7 + $0x12c] sm:$0xf]
    %v2331 = vld [vmem:[#allocation7 + $0x130] sm:$0xf]
    %v2332 = vld [vmem:[#allocation7 + $0x134] sm:$0xf]
    %v2333 = vld [vmem:[#allocation7 + $0x138] sm:$0xf]
    %v2334 = vld [vmem:[#allocation7 + $0x13c] sm:$0xf]
    %v2335 = vld [vmem:[#allocation7 + $0x140] sm:$0xf]
    %v2336 = vld [vmem:[#allocation7 + $0x144] sm:$0xf]
    %v2337 = vld [vmem:[#allocation7 + $0x148] sm:$0xf]
    %v2338 = vld [vmem:[#allocation7 + $0x14c] sm:$0xf]
    %v2339 = vld [vmem:[#allocation7 + $0x150] sm:$0xf]
    %v2340 = vld [vmem:[#allocation7 + $0x154] sm:$0xf]
    %v2341 = vld [vmem:[#allocation7 + $0x158] sm:$0xf]
    %v2342 = vld [vmem:[#allocation7 + $0x15c] sm:$0xf]
    %v2343 = vld [vmem:[#allocation7 + $0x160] sm:$0xf]
    %v2344 = vld [vmem:[#allocation7 + $0x164] sm:$0xf]
    %v2345 = vld [vmem:[#allocation7 + $0x168] sm:$0xf]
    %v2346 = vld [vmem:[#allocation7 + $0x16c] sm:$0xf]
    %v2347 = vld [vmem:[#allocation7 + $0x170] sm:$0xf]
    %v2348 = vld [vmem:[#allocation7 + $0x174] sm:$0xf]
    %v2349 = vld [vmem:[#allocation7 + $0x178] sm:$0xf]
    %v2350 = vld [vmem:[#allocation7 + $0x17c] sm:$0xf]
    %v2351 = vld [vmem:[#allocation8] sm:$0x1]
    %v2353 = vlaneseq
    %v2354 = vshrl.u32 %v2353, 7
    %v2355 = vsub.s32 0, %v2354
    %v2356 = vrot.slane %v2351, %v2355
    %v2454 = vunpack.c.l.b16 %v2255
    %v2455 = vunpack.c.l.b16 %v2256
    %v2456 = vunpack.c.l.b16 %v2257
    %v2457 = vunpack.c.l.b16 %v2258
    %v2458 = vunpack.c.l.b16 %v2259
    %v2459 = vunpack.c.l.b16 %v2260
    %v2460 = vunpack.c.l.b16 %v2261
    %v2461 = vunpack.c.l.b16 %v2262
    %v2462 = vunpack.c.l.b16 %v2263
    %v2463 = vunpack.c.l.b16 %v2264
    %v2464 = vunpack.c.l.b16 %v2265
    %v2465 = vunpack.c.l.b16 %v2266
    %v2466 = vunpack.c.l.b16 %v2267
    %v2467 = vunpack.c.l.b16 %v2268
    %v2468 = vunpack.c.l.b16 %v2269
    %v2469 = vunpack.c.l.b16 %v2270
    %v2470 = vunpack.c.l.b16 %v2271
    %v2471 = vunpack.c.l.b16 %v2272
    %v2472 = vunpack.c.l.b16 %v2273
    %v2473 = vunpack.c.l.b16 %v2274
    %v2474 = vunpack.c.l.b16 %v2275
    %v2475 = vunpack.c.l.b16 %v2276
    %v2476 = vunpack.c.l.b16 %v2277
    %v2477 = vunpack.c.l.b16 %v2278
    %v2478 = vunpack.c.l.b16 %v2279
    %v2479 = vunpack.c.l.b16 %v2280
    %v2480 = vunpack.c.l.b16 %v2281
    %v2481 = vunpack.c.l.b16 %v2282
    %v2482 = vunpack.c.l.b16 %v2283
    %v2483 = vunpack.c.l.b16 %v2284
    %v2484 = vunpack.c.l.b16 %v2285
    %v2485 = vunpack.c.l.b16 %v2286
    %v2486 = vunpack.c.l.b16 %v2287
    %v2487 = vunpack.c.l.b16 %v2288
    %v2488 = vunpack.c.l.b16 %v2289
    %v2489 = vunpack.c.l.b16 %v2290
    %v2490 = vunpack.c.l.b16 %v2291
    %v2491 = vunpack.c.l.b16 %v2292
    %v2492 = vunpack.c.l.b16 %v2293
    %v2493 = vunpack.c.l.b16 %v2294
    %v2494 = vunpack.c.l.b16 %v2295
    %v2495 = vunpack.c.l.b16 %v2296
    %v2496 = vunpack.c.l.b16 %v2297
    %v2497 = vunpack.c.l.b16 %v2298
    %v2498 = vunpack.c.l.b16 %v2299
    %v2499 = vunpack.c.l.b16 %v2300
    %v2500 = vunpack.c.l.b16 %v2301
    %v2501 = vunpack.c.l.b16 %v2302
    %v2502 = vunpack.c.l.b16 %v2303
    %v2503 = vunpack.c.l.b16 %v2304
    %v2504 = vunpack.c.l.b16 %v2305
    %v2505 = vunpack.c.l.b16 %v2306
    %v2506 = vunpack.c.l.b16 %v2307
    %v2507 = vunpack.c.l.b16 %v2308
    %v2508 = vunpack.c.l.b16 %v2309
    %v2509 = vunpack.c.l.b16 %v2310
    %v2510 = vunpack.c.l.b16 %v2311
    %v2511 = vunpack.c.l.b16 %v2312
    %v2512 = vunpack.c.l.b16 %v2313
    %v2513 = vunpack.c.l.b16 %v2314
    %v2514 = vunpack.c.l.b16 %v2315
    %v2515 = vunpack.c.l.b16 %v2316
    %v2516 = vunpack.c.l.b16 %v2317
    %v2517 = vunpack.c.l.b16 %v2318
    %v2518 = vunpack.c.l.b16 %v2319
    %v2519 = vunpack.c.l.b16 %v2320
    %v2520 = vunpack.c.l.b16 %v2321
    %v2521 = vunpack.c.l.b16 %v2322
    %v2522 = vunpack.c.l.b16 %v2323
    %v2523 = vunpack.c.l.b16 %v2324
    %v2524 = vunpack.c.l.b16 %v2325
    %v2525 = vunpack.c.l.b16 %v2326
    %v2526 = vunpack.c.l.b16 %v2327
    %v2527 = vunpack.c.l.b16 %v2328
    %v2528 = vunpack.c.l.b16 %v2329
    %v2529 = vunpack.c.l.b16 %v2330
    %v2530 = vunpack.c.l.b16 %v2331
    %v2531 = vunpack.c.l.b16 %v2332
    %v2532 = vunpack.c.l.b16 %v2333
    %v2533 = vunpack.c.l.b16 %v2334
    %v2534 = vunpack.c.l.b16 %v2335
    %v2535 = vunpack.c.l.b16 %v2336
    %v2536 = vunpack.c.l.b16 %v2337
    %v2537 = vunpack.c.l.b16 %v2338
    %v2538 = vunpack.c.l.b16 %v2339
    %v2539 = vunpack.c.l.b16 %v2340
    %v2540 = vunpack.c.l.b16 %v2341
    %v2541 = vunpack.c.l.b16 %v2342
    %v2542 = vunpack.c.l.b16 %v2343
    %v2543 = vunpack.c.l.b16 %v2344
    %v2544 = vunpack.c.l.b16 %v2345
    %v2545 = vunpack.c.l.b16 %v2346
    %v2546 = vunpack.c.l.b16 %v2347
    %v2547 = vunpack.c.l.b16 %v2348
    %v2548 = vunpack.c.l.b16 %v2349
    %v2549 = vunpack.c.l.b16 %v2350
    %v2550 = vpack.c.b16 %v2455, %v2454
    %v2551 = vpack.c.b16 %v2457, %v2456
    %v2552 = vpack.c.b16 %v2459, %v2458
    %v2553 = vpack.c.b16 %v2461, %v2460
    %v2554 = vpack.c.b16 %v2463, %v2462
    %v2555 = vpack.c.b16 %v2465, %v2464
    %v2556 = vpack.c.b16 %v2467, %v2466
    %v2557 = vpack.c.b16 %v2469, %v2468
    %v2558 = vpack.c.b16 %v2471, %v2470
    %v2559 = vpack.c.b16 %v2473, %v2472
    %v2560 = vpack.c.b16 %v2475, %v2474
    %v2561 = vpack.c.b16 %v2477, %v2476
    %v2562 = vpack.c.b16 %v2479, %v2478
    %v2563 = vpack.c.b16 %v2481, %v2480
    %v2564 = vpack.c.b16 %v2483, %v2482
    %v2565 = vpack.c.b16 %v2485, %v2484
    %v2566 = vpack.c.b16 %v2487, %v2486
    %v2567 = vpack.c.b16 %v2489, %v2488
    %v2568 = vpack.c.b16 %v2491, %v2490
    %v2569 = vpack.c.b16 %v2493, %v2492
    %v2570 = vpack.c.b16 %v2495, %v2494
    %v2571 = vpack.c.b16 %v2497, %v2496
    %v2572 = vpack.c.b16 %v2499, %v2498
    %v2573 = vpack.c.b16 %v2501, %v2500
    %v2574 = vpack.c.b16 %v2503, %v2502
    %v2575 = vpack.c.b16 %v2505, %v2504
    %v2576 = vpack.c.b16 %v2507, %v2506
    %v2577 = vpack.c.b16 %v2509, %v2508
    %v2578 = vpack.c.b16 %v2511, %v2510
    %v2579 = vpack.c.b16 %v2513, %v2512
    %v2580 = vpack.c.b16 %v2515, %v2514
    %v2581 = vpack.c.b16 %v2517, %v2516
    %v2582 = vpack.c.b16 %v2519, %v2518
    %v2583 = vpack.c.b16 %v2521, %v2520
    %v2584 = vpack.c.b16 %v2523, %v2522
    %v2585 = vpack.c.b16 %v2525, %v2524
    %v2586 = vpack.c.b16 %v2527, %v2526
    %v2587 = vpack.c.b16 %v2529, %v2528
    %v2588 = vpack.c.b16 %v2531, %v2530
    %v2589 = vpack.c.b16 %v2533, %v2532
    %v2590 = vpack.c.b16 %v2535, %v2534
    %v2591 = vpack.c.b16 %v2537, %v2536
    %v2592 = vpack.c.b16 %v2539, %v2538
    %v2593 = vpack.c.b16 %v2541, %v2540
    %v2594 = vpack.c.b16 %v2543, %v2542
    %v2595 = vpack.c.b16 %v2545, %v2544
    %v2596 = vpack.c.b16 %v2547, %v2546
    %v2597 = vpack.c.b16 %v2549, %v2548
    %2646 = vmatprep.subr.bf16.mxu0 0
    %2647 = vmatpush1.bf16.msra.mxu0 %v2550
    %2648 = vmatprep.subr.bf16.mxu0 0
    %2649 = vmatpush1.bf16.msra.mxu0 %v2551
    %2650 = vmatprep.subr.bf16.mxu0 0
    %2651 = vmatpush1.bf16.msra.mxu0 %v2552
    %2652 = vmatprep.subr.bf16.mxu0 0
    %2653 = vmatpush1.bf16.msra.mxu0 %v2553
    %2654 = vmatprep.subr.bf16.mxu0 0
    %2655 = vmatpush1.bf16.msra.mxu0 %v2554
    %2656 = vmatprep.subr.bf16.mxu0 0
    %2657 = vmatpush1.bf16.msra.mxu0 %v2555
    %2658 = vmatprep.subr.bf16.mxu0 0
    %2659 = vmatpush1.bf16.msra.mxu0 %v2556
    %2660 = vmatprep.subr.bf16.mxu0 0
    %2661 = vmatpush1.bf16.msra.mxu0 %v2557
    %2662 = vmatprep.subr.bf16.mxu0 0
    %2663 = vmatpush1.bf16.msra.mxu0 %v2558
    %2664 = vmatprep.subr.bf16.mxu0 0
    %2665 = vmatpush1.bf16.msra.mxu0 %v2559
    %2666 = vmatprep.subr.bf16.mxu0 0
    %2667 = vmatpush1.bf16.msra.mxu0 %v2560
    %2668 = vmatprep.subr.bf16.mxu0 0
    %2669 = vmatpush1.bf16.msra.mxu0 %v2561
    %2670 = vmatprep.subr.bf16.mxu0 0
    %2671 = vmatpush1.bf16.msra.mxu0 %v2562
    %2672 = vmatprep.subr.bf16.mxu0 0
    %2673 = vmatpush1.bf16.msra.mxu0 %v2563
    %2674 = vmatprep.subr.bf16.mxu0 0
    %2675 = vmatpush1.bf16.msra.mxu0 %v2564
    %2676 = vmatprep.subr.bf16.mxu0 0
    %2677 = vmatpush1.bf16.msra.mxu0 %v2565
    %2678 = vmatprep.mubr.bf16.mxu0 %v2250
    %2679 = vmatmul.mubr.bf16.gmra.mrb[0].mxu0 %v2249
    %v2680 = vpop.f32.mrb[0].mxu0
    %v2681 = vadd.f32 %v2356, %v2680
    %v2682 = vpop.f32.mrb[0].mxu0
    %v2683 = vpop.f32.mrb[0].mxu0
    %v2684 = vpop.f32.mrb[0].mxu0
    %2685 = vdwg.mxu0
    %2686 = vmatprep.subr.bf16.mxu0 0
    %2687 = vmatpush1.bf16.msra.mxu0 %v2566
    %2688 = vmatprep.subr.bf16.mxu0 0
    %2689 = vmatpush1.bf16.msra.mxu0 %v2567
    %2690 = vmatprep.subr.bf16.mxu0 0
    %2691 = vmatpush1.bf16.msra.mxu0 %v2568
    %2692 = vmatprep.subr.bf16.mxu0 0
    %2693 = vmatpush1.bf16.msra.mxu0 %v2569
    %2694 = vmatprep.subr.bf16.mxu0 0
    %2695 = vmatpush1.bf16.msra.mxu0 %v2570
    %2696 = vmatprep.subr.bf16.mxu0 0
    %2697 = vmatpush1.bf16.msra.mxu0 %v2571
    %2698 = vmatprep.subr.bf16.mxu0 0
    %2699 = vmatpush1.bf16.msra.mxu0 %v2572
    %2700 = vmatprep.subr.bf16.mxu0 0
    %2701 = vmatpush1.bf16.msra.mxu0 %v2573
    %2702 = vmatprep.subr.bf16.mxu0 0
    %2703 = vmatpush1.bf16.msra.mxu0 %v2574
    %2704 = vmatprep.subr.bf16.mxu0 0
    %2705 = vmatpush1.bf16.msra.mxu0 %v2575
    %2706 = vmatprep.subr.bf16.mxu0 0
    %2707 = vmatpush1.bf16.msra.mxu0 %v2576
    %2708 = vmatprep.subr.bf16.mxu0 0
    %2709 = vmatpush1.bf16.msra.mxu0 %v2577
    %2710 = vmatprep.subr.bf16.mxu0 0
    %2711 = vmatpush1.bf16.msra.mxu0 %v2578
    %2712 = vmatprep.subr.bf16.mxu0 0
    %2713 = vmatpush1.bf16.msra.mxu0 %v2579
    %2714 = vmatprep.subr.bf16.mxu0 0
    %2715 = vmatpush1.bf16.msra.mxu0 %v2580
    %2716 = vmatprep.subr.bf16.mxu0 0
    %2717 = vmatpush1.bf16.msra.mxu0 %v2581
    %2718 = vmatprep.mubr.bf16.mxu0 %v2252
    %2719 = vmatmul.mubr.bf16.gmra.mrb[0].mxu0 %v2251
    %v2720 = vpop.f32.mrb[0].mxu0
    %v2721 = vadd.f32 %v2681, %v2720
    %v2722 = vpop.f32.mrb[0].mxu0
    %v2723 = vpop.f32.mrb[0].mxu0
    %v2724 = vpop.f32.mrb[0].mxu0
    %2725 = vdwg.mxu0
    %2726 = vmatprep.subr.bf16.mxu0 0
    %2727 = vmatpush1.bf16.msra.mxu0 %v2582
    %2728 = vmatprep.subr.bf16.mxu0 0
    %2729 = vmatpush1.bf16.msra.mxu0 %v2583
    %2730 = vmatprep.subr.bf16.mxu0 0
    %2731 = vmatpush1.bf16.msra.mxu0 %v2584
    %2732 = vmatprep.subr.bf16.mxu0 0
    %2733 = vmatpush1.bf16.msra.mxu0 %v2585
    %2734 = vmatprep.subr.bf16.mxu0 0
    %2735 = vmatpush1.bf16.msra.mxu0 %v2586
    %2736 = vmatprep.subr.bf16.mxu0 0
    %2737 = vmatpush1.bf16.msra.mxu0 %v2587
    %2738 = vmatprep.subr.bf16.mxu0 0
    %2739 = vmatpush1.bf16.msra.mxu0 %v2588
    %2740 = vmatprep.subr.bf16.mxu0 0
    %2741 = vmatpush1.bf16.msra.mxu0 %v2589
    %2742 = vmatprep.subr.bf16.mxu0 0
    %2743 = vmatpush1.bf16.msra.mxu0 %v2590
    %2744 = vmatprep.subr.bf16.mxu0 0
    %2745 = vmatpush1.bf16.msra.mxu0 %v2591
    %2746 = vmatprep.subr.bf16.mxu0 0
    %2747 = vmatpush1.bf16.msra.mxu0 %v2592
    %2748 = vmatprep.subr.bf16.mxu0 0
    %2749 = vmatpush1.bf16.msra.mxu0 %v2593
    %2750 = vmatprep.subr.bf16.mxu0 0
    %2751 = vmatpush1.bf16.msra.mxu0 %v2594
    %2752 = vmatprep.subr.bf16.mxu0 0
    %2753 = vmatpush1.bf16.msra.mxu0 %v2595
    %2754 = vmatprep.subr.bf16.mxu0 0
    %2755 = vmatpush1.bf16.msra.mxu0 %v2596
    %2756 = vmatprep.subr.bf16.mxu0 0
    %2757 = vmatpush1.bf16.msra.mxu0 %v2597
    %2758 = vmatprep.mubr.bf16.mxu0 %v2254
    %2759 = vmatmul.mubr.bf16.gmra.mrb[0].mxu0 %v2253
    %v2760 = vpop.f32.mrb[0].mxu0
    %v2761 = vadd.f32 %v2721, %v2760
    %v2762 = vpop.f32.mrb[0].mxu0
    %v2763 = vpop.f32.mrb[0].mxu0
    %v2764 = vpop.f32.mrb[0].mxu0
    %2765 = vdwg.mxu0
    %v2766 = vmax.f32 %v2761, 0.0
    %v2767 = vld [vmem:[#allocation10] sm:$0x1]
    %v2769 = vlaneseq
    %v2770 = vshrl.u32 %v2769, 7
    %v2771 = vsub.s32 0, %v2770
    %v2772 = vrot.slane %v2767, %v2771
    %v2774 = vmul.f32 %v2766, %v2772
    %2775 = vadd.xlane.f32.xlu0 %v2774
    %v2776 = vpop.xlane.xlu0 %2775
    %s2777 = sld [smem:[#allocation2]]
    %v2778 = vstv %s2777
    %v2779 = vadd.f32 %v2776, %v2778
    %v2780 = vxor.u32 %v2779, 2147483648
    %v2781 = vmul.f32 %v2780, 1.442695
    %v2782 = vpow.pop %v2781
    %v2783 = vadd.f32 %v2782, 1.0
    %v2784 = vrcp.pop %v2783
    %v2785 = vmul.f32 1.0, %v2784
    %2786 = vst [vmem:[%s7] sm:$0xff] %v2785
    // Predicated region
    $region50: #{siamese_margin_forward.1} parent=1 // pred_check
      _
    $region51: #{siamese_margin_forward.1} parent=1 // pred_check_branch
      %2788 = sbr.rel (0) target = $region53
    $region52: #{siamese_margin_forward.1} parent=1 // pred_region
      _
    $region53: #{siamese_margin_forward.1} parent=1 // pred_fallthru
      _
    // Predicated region
    $region54: #{siamese_margin_forward.1} parent=1 // pred_check
      _
    $region55: #{siamese_margin_forward.1} parent=1 // pred_check_branch
      %2790 = sbr.rel (0) target = $region57
    $region56: #{siamese_margin_forward.1} parent=1 // pred_region
      _
    $region57: #{siamese_margin_forward.1} parent=1 // pred_fallthru
      _
    %2791 = vsyncpa [#allocation4], 1
    %2792 = vsyncpa [#allocation6], 1
    %2793 = vsyncpa [#allocation9], 1

</llo_original>
